<compile_context>
chip_gen: v7x
topology: tpu7x:2x2x1
jax: 0.10.0
libtpu: 0.0.40
codegen_flags: <defaults>
</compile_context>

<pallas_src>
import math
import jax
import jax.numpy as jnp
from jax.experimental import pallas as pl
from jax.experimental.pallas import tpu as pltpu


# ----------------------------- Pallas kernel ---------------------------------

def _layernorm(v, g, b, eps=1e-5):
    mu = jnp.mean(v, axis=-1, keepdims=True)
    var = jnp.mean((v - mu) ** 2, axis=-1, keepdims=True)
    return (v - mu) * jax.lax.rsqrt(var + eps) * g + b


def make_transformer_block_kernel(n_heads, head_dim, seq_len, q_tile):
    H, hd, S, TQ = n_heads, head_dim, seq_len, q_tile
    D = H * hd
    scale = 1.0 / math.sqrt(hd)

    def kernel(x_ref,
               wqkv_ref, bqkv_ref, wo_ref, bo_ref,
               g1_ref, be1_ref, g2_ref, be2_ref,
               w1_ref, b1_ref, w2_ref, b2_ref,
               o_ref,
               q_scr, k_scr, v_scr):
        qi = pl.program_id(1)

        # ---- once per batch element: LN1 + fused QKV projection over the whole sequence ----
        @pl.when(qi == 0)
        def _():
            xf = x_ref[...].astype(jnp.float32)                       # (S, D)
            h1 = _layernorm(xf, g1_ref[...], be1_ref[...])
            qkv = jnp.dot(h1.astype(jnp.bfloat16), wqkv_ref[...],
                          preferred_element_type=jnp.float32) + bqkv_ref[...]   # (S, 3D)
            # stash head-major (H, S, hd) in bf16; softmax scale folded into Q
            for h in range(H):
                lo = h * hd
                q_scr[h] = (qkv[:, lo:lo + hd] * scale).astype(jnp.bfloat16)
                k_scr[h] = qkv[:, D + lo:D + lo + hd].astype(jnp.bfloat16)
                v_scr[h] = qkv[:, 2 * D + lo:2 * D + lo + hd].astype(jnp.bfloat16)

        # ---- per query tile: attention (batched over heads) ----
        q_start = pl.multiple_of(qi * TQ, TQ)
        qh = q_scr[:, pl.ds(q_start, TQ), :]                          # (H, TQ, hd) bf16
        kh = k_scr[...]                                               # (H, S, hd)  bf16
        vh = v_scr[...]                                               # (H, S, hd)  bf16

        s = jnp.einsum('hqd,hkd->hqk', qh, kh,
                       preferred_element_type=jnp.float32)            # (H, TQ, S) f32
        s = s - jnp.max(s, axis=-1, keepdims=True)
        p = jnp.exp(s)
        p = p * pl.reciprocal(jnp.sum(p, axis=-1, keepdims=True), approx=True)
        ctx = jnp.einsum('hqk,hkd->hqd', p.astype(jnp.bfloat16), vh,
                         preferred_element_type=jnp.float32)           # (H, TQ, hd) f32

        # merge heads -> (TQ, D), output projection, residual 1
        attn = jnp.concatenate([ctx[h] for h in range(H)], axis=-1)    # (TQ, D) f32
        attn = jnp.dot(attn.astype(jnp.bfloat16), wo_ref[...],
                       preferred_element_type=jnp.float32) + bo_ref[...]

        x_t = x_ref[pl.ds(q_start, TQ), :].astype(jnp.float32)         # (TQ, D)
        x1 = x_t + attn

        # ---- LN2 + feed-forward + residual 2 (dropout = identity at inference) ----
        h2 = _layernorm(x1, g2_ref[...], be2_ref[...])
        f = jnp.dot(h2.astype(jnp.bfloat16), w1_ref[...],
                    preferred_element_type=jnp.float32) + b1_ref[...]
        f = jnp.maximum(f, 0.0)
        y = jnp.dot(f.astype(jnp.bfloat16), w2_ref[...],
                    preferred_element_type=jnp.float32) + b2_ref[...]

        o_ref[...] = (x1 + y).astype(o_ref.dtype)

    return kernel


def _pick_q_tile(S):
    for t in (256, 128):
        if S % t == 0:
            return t
    return S


def transformer_block(x, params, n_heads):
    """x: (B, S, D) float32. params: dict of (in, out) f32 weights and (1, dim) biases."""
    B, S, D = x.shape
    assert D % n_heads == 0
    hd = D // n_heads
    d_ff = params["w1"].shape[1]
    TQ = _pick_q_tile(S)
    n_q = S // TQ

    # Host-side packing: fused QKV weight/bias; matmul weights cast to bf16 (f32 accumulate).
    wqkv = jnp.concatenate([params["wq"], params["wk"], params["wv"]], axis=1).astype(jnp.bfloat16)
    bqkv = jnp.concatenate([params["bq"], params["bk"], params["bv"]], axis=1)        # f32 (1, 3D)
    wo = params["wo"].astype(jnp.bfloat16)
    w1 = params["w1"].astype(jnp.bfloat16)
    w2 = params["w2"].astype(jnp.bfloat16)

    kernel = make_transformer_block_kernel(n_heads, hd, S, TQ)

    def const_spec(shape):
        # Weight/bias specs: constant index_map -> fetched once, resident across the grid.
        # TODO(synk): on VMEM-tight configs (v7x) add pipeline_mode=pl.Buffered(1) / manual
        # single-buffering for these invariant operands.
        return pl.BlockSpec(shape, lambda b, q: (0,) * len(shape))

    in_specs = [
        pl.BlockSpec((None, S, D), lambda b, q: (b, 0, 0)),      # x: full sequence slab per b
        const_spec((D, 3 * D)), const_spec((1, 3 * D)),          # fused Wqkv, bqkv
        const_spec((D, D)), const_spec((1, D)),                  # Wo, bo
        const_spec((1, D)), const_spec((1, D)),                  # ln1 gamma, beta
        const_spec((1, D)), const_spec((1, D)),                  # ln2 gamma, beta
        const_spec((D, d_ff)), const_spec((1, d_ff)),            # W1, b1
        const_spec((d_ff, D)), const_spec((1, D)),               # W2, b2
    ]

    flops = B * (2 * S * D * 3 * D      # fused QKV projection
                 + 4 * S * S * D        # QK^T and PV
                 + 2 * S * D * D        # output projection
                 + 4 * S * D * d_ff)    # FFN
    transcendentals = B * (n_heads * S * S + 4 * S)
    bytes_accessed = (2 * B * S * D) * 4 \
        + (wqkv.size + wo.size + w1.size + w2.size) * 2 \
        + (bqkv.size + 5 * D + d_ff) * 4

    return pl.pallas_call(
        kernel,
        out_shape=jax.ShapeDtypeStruct((B, S, D), x.dtype),
        grid_spec=pltpu.PrefetchScalarGridSpec(
            num_scalar_prefetch=0,
            grid=(B, n_q),
            in_specs=in_specs,
            out_specs=pl.BlockSpec((None, TQ, D), lambda b, q: (b, q, 0)),
            scratch_shapes=[
                pltpu.VMEM((n_heads, S, hd), jnp.bfloat16),   # Q (scale pre-folded)
                pltpu.VMEM((n_heads, S, hd), jnp.bfloat16),   # K
                pltpu.VMEM((n_heads, S, hd), jnp.bfloat16),   # V
            ],
        ),
        compiler_params=pltpu.CompilerParams(
            dimension_semantics=("parallel", "arbitrary"),
            vmem_limit_bytes=48 * 1024 * 1024,
        ),
        cost_estimate=pl.CostEstimate(
            flops=int(flops),
            transcendentals=int(transcendentals),
            bytes_accessed=int(bytes_accessed),
        ),
    )(
        x,
        wqkv, bqkv, wo, params["bo"],
        params["g1"], params["be1"], params["g2"], params["be2"],
        w1, params["b1"], w2, params["b2"],
    )


# ------------------------- parameter init & reference ------------------------

def xavier_uniform(key, fan_out, fan_in):
    """PyTorch nn.Linear weight is (out, in); xavier bound uses fan_in+fan_out.
    Returns the kernel-ready transposed (in, out) matrix."""
    bound = math.sqrt(6.0 / (fan_in + fan_out))
    w = jax.random.uniform(key, (fan_out, fan_in), jnp.float32, -bound, bound)
    return w.T  # (in, out) so kernel does x @ W


def init_params(key, d_model, d_ff):
    keys = jax.random.split(key, 6)
    z_d = jnp.zeros((1, d_model), jnp.float32)
    return {
        "wq": xavier_uniform(keys[0], d_model, d_model), "bq": z_d,
        "wk": xavier_uniform(keys[1], d_model, d_model), "bk": z_d,
        "wv": xavier_uniform(keys[2], d_model, d_model), "bv": z_d,
        "wo": xavier_uniform(keys[3], d_model, d_model), "bo": z_d,
        "g1": jnp.ones((1, d_model), jnp.float32), "be1": z_d,
        "g2": jnp.ones((1, d_model), jnp.float32), "be2": z_d,
        "w1": xavier_uniform(keys[4], d_ff, d_model), "b1": jnp.zeros((1, d_ff), jnp.float32),
        "w2": xavier_uniform(keys[5], d_model, d_ff), "b2": z_d,
    }


def reference_transformer_block(x, p, n_heads):
    """Pure-JAX f32 reference mirroring the PyTorch forward (mask=None, dropout off)."""
    B, S, D = x.shape
    h = D // n_heads

    def ln(v, g, b, eps=1e-5):
        mu = jnp.mean(v, axis=-1, keepdims=True)
        var = jnp.mean((v - mu) ** 2, axis=-1, keepdims=True)
        return (v - mu) / jnp.sqrt(var + eps) * g + b

    h1 = ln(x, p["g1"][0], p["be1"][0])
    q = h1 @ p["wq"] + p["bq"][0]
    k = h1 @ p["wk"] + p["bk"][0]
    v = h1 @ p["wv"] + p["bv"][0]
    q = q.reshape(B, S, n_heads, h).transpose(0, 2, 1, 3)
    k = k.reshape(B, S, n_heads, h).transpose(0, 2, 1, 3)
    v = v.reshape(B, S, n_heads, h).transpose(0, 2, 1, 3)
    qk = jnp.einsum("bnqh,bnkh->bnqk", q, k) / math.sqrt(h)
    qk = jax.nn.softmax(qk, axis=-1)
    qkv = jnp.einsum("bnqk,bnkh->bnqh", qk, v).transpose(0, 2, 1, 3).reshape(B, S, D)
    x1 = x + (qkv @ p["wo"] + p["bo"][0])
    h2 = ln(x1, p["g2"][0], p["be2"][0])
    f = jnp.maximum(h2 @ p["w1"] + p["b1"][0], 0.0)
    f = f @ p["w2"] + p["b2"][0]
    return x1 + f


# ------------------------------------ main ------------------------------------

if __name__ == "__main__":
    B, S, D = 2, 8, 32
    n_heads, d_ff = 4, 64

    key = jax.random.PRNGKey(0)
    kx, kp = jax.random.split(key)
    x = jax.random.normal(kx, (B, S, D), jnp.float32)
    params = init_params(kp, D, d_ff)

    out = transformer_block(x, params, n_heads)
    out = jax.block_until_ready(out)

    ref = reference_transformer_block(x, params, n_heads)
    assert out.shape == (B, S, D)
    # Tolerance relaxed vs. the pure-f32 reference because matmul inputs/weights are bf16
    # (f32 accumulation) and the softmax uses the EUP approximate reciprocal.
    assert jnp.allclose(out, ref, atol=5e-2, rtol=5e-2), "mismatch vs reference"

    # TODO(synk): optional attention mask and training-mode dropout are not implemented
    # (mask=None inference path only); online-softmax K/V streaming would be the next step
    # for very long sequences.
    print("KERNEL_OK")
</pallas_src>

<mosaic_0001>
module attributes {stable_mosaic.version = 11 : i64} {
  func.func @kernel(%arg0: i32, %arg1: i32, %arg2: memref<1x8x32xf32, #tpu.memory_space<vmem>>, %arg3: memref<32x96xbf16, #tpu.memory_space<vmem>>, %arg4: memref<1x96xf32, #tpu.memory_space<vmem>>, %arg5: memref<32x32xbf16, #tpu.memory_space<vmem>>, %arg6: memref<1x32xf32, #tpu.memory_space<vmem>>, %arg7: memref<1x32xf32, #tpu.memory_space<vmem>>, %arg8: memref<1x32xf32, #tpu.memory_space<vmem>>, %arg9: memref<1x32xf32, #tpu.memory_space<vmem>>, %arg10: memref<1x32xf32, #tpu.memory_space<vmem>>, %arg11: memref<32x64xbf16, #tpu.memory_space<vmem>>, %arg12: memref<1x64xf32, #tpu.memory_space<vmem>>, %arg13: memref<64x32xbf16, #tpu.memory_space<vmem>>, %arg14: memref<1x32xf32, #tpu.memory_space<vmem>>, %arg15: memref<1x8x32xf32, #tpu.memory_space<vmem>>, %arg16: memref<4x8x8xbf16, #tpu.memory_space<vmem>>, %arg17: memref<4x8x8xbf16, #tpu.memory_space<vmem>>, %arg18: memref<4x8x8xbf16, #tpu.memory_space<vmem>>) attributes {dimension_semantics = [#tpu.dimension_semantics<parallel>, #tpu.dimension_semantics<arbitrary>], iteration_bounds = array<i64: 2, 1>, scalar_prefetch = 0 : i64, scratch_operands = 3 : i64, tpu.core_type = #tpu.core_type<tc>, window_params = [{transform_indices = @transform_0, window_bounds = array<i64: 1, 8, 32>}, {pipeline_mode = #tpu.pipeline_mode<synchronous>, transform_indices = @transform_1, window_bounds = array<i64: 32, 96>}, {pipeline_mode = #tpu.pipeline_mode<synchronous>, transform_indices = @transform_2, window_bounds = array<i64: 1, 96>}, {pipeline_mode = #tpu.pipeline_mode<synchronous>, transform_indices = @transform_3, window_bounds = array<i64: 32, 32>}, {pipeline_mode = #tpu.pipeline_mode<synchronous>, transform_indices = @transform_4, window_bounds = array<i64: 1, 32>}, {pipeline_mode = #tpu.pipeline_mode<synchronous>, transform_indices = @transform_5, window_bounds = array<i64: 1, 32>}, {pipeline_mode = #tpu.pipeline_mode<synchronous>, transform_indices = @transform_6, window_bounds = array<i64: 1, 32>}, {pipeline_mode = #tpu.pipeline_mode<synchronous>, transform_indices = @transform_7, window_bounds = array<i64: 1, 32>}, {pipeline_mode = #tpu.pipeline_mode<synchronous>, transform_indices = @transform_8, window_bounds = array<i64: 1, 32>}, {pipeline_mode = #tpu.pipeline_mode<synchronous>, transform_indices = @transform_9, window_bounds = array<i64: 32, 64>}, {pipeline_mode = #tpu.pipeline_mode<synchronous>, transform_indices = @transform_10, window_bounds = array<i64: 1, 64>}, {pipeline_mode = #tpu.pipeline_mode<synchronous>, transform_indices = @transform_11, window_bounds = array<i64: 64, 32>}, {pipeline_mode = #tpu.pipeline_mode<synchronous>, transform_indices = @transform_12, window_bounds = array<i64: 1, 32>}, {transform_indices = @transform_13, window_bounds = array<i64: 1, 8, 32>}]} {
    %c0_i32 = arith.constant 0 : i32
    %0 = arith.cmpi eq, %arg1, %c0_i32 : i32
    %1 = arith.extui %0 : i1 to i32
    %c0_i32_0 = arith.constant 0 : i32
    %2 = arith.cmpi ne, %1, %c0_i32_0 : i32
    scf.if %2 {
      %c0_41 = arith.constant 0 : index
      %c0_42 = arith.constant 0 : index
      %c0_43 = arith.constant 0 : index
      %83 = vector.load %arg2[%c0_41, %c0_42, %c0_43] : memref<1x8x32xf32, #tpu.memory_space<vmem>>, vector<1x8x32xf32>
      %84 = vector.shape_cast %83 : vector<1x8x32xf32> to vector<8x32xf32>
      %c0_44 = arith.constant 0 : index
      %c0_45 = arith.constant 0 : index
      %85 = vector.load %arg7[%c0_44, %c0_45] : memref<1x32xf32, #tpu.memory_space<vmem>>, vector<1x32xf32>
      %c0_46 = arith.constant 0 : index
      %c0_47 = arith.constant 0 : index
      %86 = vector.load %arg8[%c0_46, %c0_47] : memref<1x32xf32, #tpu.memory_space<vmem>>, vector<1x32xf32>
      %cst_48 = arith.constant dense<0.000000e+00> : vector<8xf32>
      %87 = vector.multi_reduction <add>, %84, %cst_48 [1] : vector<8x32xf32> to vector<8xf32>
      %88 = vector.shape_cast %87 : vector<8xf32> to vector<8x1xf32>
      %cst_49 = arith.constant 3.200000e+01 : f32
      %89 = vector.broadcast %cst_49 : f32 to vector<8x1xf32>
      %90 = arith.divf %88, %89 : vector<8x1xf32>
      %91 = vector.broadcast %90 : vector<8x1xf32> to vector<8x32xf32>
      %92 = arith.subf %84, %91 : vector<8x32xf32>
      %93 = arith.mulf %92, %92 : vector<8x32xf32>
      %cst_50 = arith.constant dense<0.000000e+00> : vector<8xf32>
      %94 = vector.multi_reduction <add>, %93, %cst_50 [1] : vector<8x32xf32> to vector<8xf32>
      %95 = vector.shape_cast %94 : vector<8xf32> to vector<8x1xf32>
      %cst_51 = arith.constant 3.200000e+01 : f32
      %96 = vector.broadcast %cst_51 : f32 to vector<8x1xf32>
      %97 = arith.divf %95, %96 : vector<8x1xf32>
      %98 = vector.broadcast %90 : vector<8x1xf32> to vector<8x32xf32>
      %99 = arith.subf %84, %98 : vector<8x32xf32>
      %cst_52 = arith.constant 9.99999974E-6 : f32
      %100 = vector.broadcast %cst_52 : f32 to vector<8x1xf32>
      %101 = arith.addf %97, %100 : vector<8x1xf32>
      %102 = math.rsqrt %101 : vector<8x1xf32>
      %103 = vector.broadcast %102 : vector<8x1xf32> to vector<8x32xf32>
      %104 = arith.mulf %99, %103 : vector<8x32xf32>
      %105 = vector.broadcast %85 : vector<1x32xf32> to vector<8x32xf32>
      %106 = arith.mulf %104, %105 : vector<8x32xf32>
      %107 = vector.broadcast %86 : vector<1x32xf32> to vector<8x32xf32>
      %108 = arith.addf %106, %107 : vector<8x32xf32>
      %109 = arith.truncf %108 : vector<8x32xf32> to vector<8x32xbf16>
      %c0_53 = arith.constant 0 : index
      %c0_54 = arith.constant 0 : index
      %110 = vector.load %arg3[%c0_53, %c0_54] : memref<32x96xbf16, #tpu.memory_space<vmem>>, vector<32x96xbf16>
      %cst_55 = arith.constant dense<0.000000e+00> : vector<8x96xf32>
      %111 = tpu.matmul %109, %110, %cst_55 {dimension_numbers = #tpu.dot_dimension_numbers<[1], [0], [0], [1], [0, 0, 1, 1], [], []>} : vector<8x32xbf16>, vector<32x96xbf16>, vector<8x96xf32> -> vector<8x96xf32>
      %c0_56 = arith.constant 0 : index
      %c0_57 = arith.constant 0 : index
      %112 = vector.load %arg4[%c0_56, %c0_57] : memref<1x96xf32, #tpu.memory_space<vmem>>, vector<1x96xf32>
      %113 = vector.broadcast %112 : vector<1x96xf32> to vector<8x96xf32>
      %114 = arith.addf %111, %113 : vector<8x96xf32>
      %115 = vector.extract_strided_slice %114 {offsets = [0, 0], sizes = [8, 8], strides = [1, 1]} : vector<8x96xf32> to vector<8x8xf32>
      %cst_58 = arith.constant 0.353553385 : f32
      %116 = vector.broadcast %cst_58 : f32 to vector<8x8xf32>
      %117 = arith.mulf %115, %116 : vector<8x8xf32>
      %118 = arith.truncf %117 : vector<8x8xf32> to vector<8x8xbf16>
      %c0_59 = arith.constant 0 : index
      %c0_60 = arith.constant 0 : index
      %c0_61 = arith.constant 0 : index
      %119 = vector.load %arg16[%c0_59, %c0_60, %c0_61] : memref<4x8x8xbf16, #tpu.memory_space<vmem>>, vector<1x8x8xbf16>
      %120 = vector.shape_cast %119 : vector<1x8x8xbf16> to vector<8x8xbf16>
      %121 = vector.shape_cast %118 : vector<8x8xbf16> to vector<1x8x8xbf16>
      tpu.vector_store %arg16[%c0_59, %c0_60, %c0_61], %121 {strides = array<i32>} : memref<4x8x8xbf16, #tpu.memory_space<vmem>>, vector<1x8x8xbf16>,
      %122 = vector.extract_strided_slice %114 {offsets = [0, 32], sizes = [8, 8], strides = [1, 1]} : vector<8x96xf32> to vector<8x8xf32>
      %123 = arith.truncf %122 : vector<8x8xf32> to vector<8x8xbf16>
      %c0_62 = arith.constant 0 : index
      %c0_63 = arith.constant 0 : index
      %c0_64 = arith.constant 0 : index
      %124 = vector.load %arg17[%c0_62, %c0_63, %c0_64] : memref<4x8x8xbf16, #tpu.memory_space<vmem>>, vector<1x8x8xbf16>
      %125 = vector.shape_cast %124 : vector<1x8x8xbf16> to vector<8x8xbf16>
      %126 = vector.shape_cast %123 : vector<8x8xbf16> to vector<1x8x8xbf16>
      tpu.vector_store %arg17[%c0_62, %c0_63, %c0_64], %126 {strides = array<i32>} : memref<4x8x8xbf16, #tpu.memory_space<vmem>>, vector<1x8x8xbf16>,
      %127 = vector.extract_strided_slice %114 {offsets = [0, 64], sizes = [8, 8], strides = [1, 1]} : vector<8x96xf32> to vector<8x8xf32>
      %128 = arith.truncf %127 : vector<8x8xf32> to vector<8x8xbf16>
      %c0_65 = arith.constant 0 : index
      %c0_66 = arith.constant 0 : index
      %c0_67 = arith.constant 0 : index
      %129 = vector.load %arg18[%c0_65, %c0_66, %c0_67] : memref<4x8x8xbf16, #tpu.memory_space<vmem>>, vector<1x8x8xbf16>
      %130 = vector.shape_cast %129 : vector<1x8x8xbf16> to vector<8x8xbf16>
      %131 = vector.shape_cast %128 : vector<8x8xbf16> to vector<1x8x8xbf16>
      tpu.vector_store %arg18[%c0_65, %c0_66, %c0_67], %131 {strides = array<i32>} : memref<4x8x8xbf16, #tpu.memory_space<vmem>>, vector<1x8x8xbf16>,
      %132 = vector.extract_strided_slice %114 {offsets = [0, 8], sizes = [8, 8], strides = [1, 1]} : vector<8x96xf32> to vector<8x8xf32>
      %cst_68 = arith.constant 0.353553385 : f32
      %133 = vector.broadcast %cst_68 : f32 to vector<8x8xf32>
      %134 = arith.mulf %132, %133 : vector<8x8xf32>
      %135 = arith.truncf %134 : vector<8x8xf32> to vector<8x8xbf16>
      %c1 = arith.constant 1 : index
      %c0_69 = arith.constant 0 : index
      %c0_70 = arith.constant 0 : index
      %136 = vector.load %arg16[%c1, %c0_69, %c0_70] : memref<4x8x8xbf16, #tpu.memory_space<vmem>>, vector<1x8x8xbf16>
      %137 = vector.shape_cast %136 : vector<1x8x8xbf16> to vector<8x8xbf16>
      %138 = vector.shape_cast %135 : vector<8x8xbf16> to vector<1x8x8xbf16>
      tpu.vector_store %arg16[%c1, %c0_69, %c0_70], %138 {strides = array<i32>} : memref<4x8x8xbf16, #tpu.memory_space<vmem>>, vector<1x8x8xbf16>,
      %139 = vector.extract_strided_slice %114 {offsets = [0, 40], sizes = [8, 8], strides = [1, 1]} : vector<8x96xf32> to vector<8x8xf32>
      %140 = arith.truncf %139 : vector<8x8xf32> to vector<8x8xbf16>
      %c1_71 = arith.constant 1 : index
      %c0_72 = arith.constant 0 : index
      %c0_73 = arith.constant 0 : index
      %141 = vector.load %arg17[%c1_71, %c0_72, %c0_73] : memref<4x8x8xbf16, #tpu.memory_space<vmem>>, vector<1x8x8xbf16>
      %142 = vector.shape_cast %141 : vector<1x8x8xbf16> to vector<8x8xbf16>
      %143 = vector.shape_cast %140 : vector<8x8xbf16> to vector<1x8x8xbf16>
      tpu.vector_store %arg17[%c1_71, %c0_72, %c0_73], %143 {strides = array<i32>} : memref<4x8x8xbf16, #tpu.memory_space<vmem>>, vector<1x8x8xbf16>,
      %144 = vector.extract_strided_slice %114 {offsets = [0, 72], sizes = [8, 8], strides = [1, 1]} : vector<8x96xf32> to vector<8x8xf32>
      %145 = arith.truncf %144 : vector<8x8xf32> to vector<8x8xbf16>
      %c1_74 = arith.constant 1 : index
      %c0_75 = arith.constant 0 : index
      %c0_76 = arith.constant 0 : index
      %146 = vector.load %arg18[%c1_74, %c0_75, %c0_76] : memref<4x8x8xbf16, #tpu.memory_space<vmem>>, vector<1x8x8xbf16>
      %147 = vector.shape_cast %146 : vector<1x8x8xbf16> to vector<8x8xbf16>
      %148 = vector.shape_cast %145 : vector<8x8xbf16> to vector<1x8x8xbf16>
      tpu.vector_store %arg18[%c1_74, %c0_75, %c0_76], %148 {strides = array<i32>} : memref<4x8x8xbf16, #tpu.memory_space<vmem>>, vector<1x8x8xbf16>,
      %149 = vector.extract_strided_slice %114 {offsets = [0, 16], sizes = [8, 8], strides = [1, 1]} : vector<8x96xf32> to vector<8x8xf32>
      %cst_77 = arith.constant 0.353553385 : f32
      %150 = vector.broadcast %cst_77 : f32 to vector<8x8xf32>
      %151 = arith.mulf %149, %150 : vector<8x8xf32>
      %152 = arith.truncf %151 : vector<8x8xf32> to vector<8x8xbf16>
      %c2 = arith.constant 2 : index
      %c0_78 = arith.constant 0 : index
      %c0_79 = arith.constant 0 : index
      %153 = vector.load %arg16[%c2, %c0_78, %c0_79] : memref<4x8x8xbf16, #tpu.memory_space<vmem>>, vector<1x8x8xbf16>
      %154 = vector.shape_cast %153 : vector<1x8x8xbf16> to vector<8x8xbf16>
      %155 = vector.shape_cast %152 : vector<8x8xbf16> to vector<1x8x8xbf16>
      tpu.vector_store %arg16[%c2, %c0_78, %c0_79], %155 {strides = array<i32>} : memref<4x8x8xbf16, #tpu.memory_space<vmem>>, vector<1x8x8xbf16>,
      %156 = vector.extract_strided_slice %114 {offsets = [0, 48], sizes = [8, 8], strides = [1, 1]} : vector<8x96xf32> to vector<8x8xf32>
      %157 = arith.truncf %156 : vector<8x8xf32> to vector<8x8xbf16>
      %c2_80 = arith.constant 2 : index
      %c0_81 = arith.constant 0 : index
      %c0_82 = arith.constant 0 : index
      %158 = vector.load %arg17[%c2_80, %c0_81, %c0_82] : memref<4x8x8xbf16, #tpu.memory_space<vmem>>, vector<1x8x8xbf16>
      %159 = vector.shape_cast %158 : vector<1x8x8xbf16> to vector<8x8xbf16>
      %160 = vector.shape_cast %157 : vector<8x8xbf16> to vector<1x8x8xbf16>
      tpu.vector_store %arg17[%c2_80, %c0_81, %c0_82], %160 {strides = array<i32>} : memref<4x8x8xbf16, #tpu.memory_space<vmem>>, vector<1x8x8xbf16>,
      %161 = vector.extract_strided_slice %114 {offsets = [0, 80], sizes = [8, 8], strides = [1, 1]} : vector<8x96xf32> to vector<8x8xf32>
      %162 = arith.truncf %161 : vector<8x8xf32> to vector<8x8xbf16>
      %c2_83 = arith.constant 2 : index
      %c0_84 = arith.constant 0 : index
      %c0_85 = arith.constant 0 : index
      %163 = vector.load %arg18[%c2_83, %c0_84, %c0_85] : memref<4x8x8xbf16, #tpu.memory_space<vmem>>, vector<1x8x8xbf16>
      %164 = vector.shape_cast %163 : vector<1x8x8xbf16> to vector<8x8xbf16>
      %165 = vector.shape_cast %162 : vector<8x8xbf16> to vector<1x8x8xbf16>
      tpu.vector_store %arg18[%c2_83, %c0_84, %c0_85], %165 {strides = array<i32>} : memref<4x8x8xbf16, #tpu.memory_space<vmem>>, vector<1x8x8xbf16>,
      %166 = vector.extract_strided_slice %114 {offsets = [0, 24], sizes = [8, 8], strides = [1, 1]} : vector<8x96xf32> to vector<8x8xf32>
      %cst_86 = arith.constant 0.353553385 : f32
      %167 = vector.broadcast %cst_86 : f32 to vector<8x8xf32>
      %168 = arith.mulf %166, %167 : vector<8x8xf32>
      %169 = arith.truncf %168 : vector<8x8xf32> to vector<8x8xbf16>
      %c3 = arith.constant 3 : index
      %c0_87 = arith.constant 0 : index
      %c0_88 = arith.constant 0 : index
      %170 = vector.load %arg16[%c3, %c0_87, %c0_88] : memref<4x8x8xbf16, #tpu.memory_space<vmem>>, vector<1x8x8xbf16>
      %171 = vector.shape_cast %170 : vector<1x8x8xbf16> to vector<8x8xbf16>
      %172 = vector.shape_cast %169 : vector<8x8xbf16> to vector<1x8x8xbf16>
      tpu.vector_store %arg16[%c3, %c0_87, %c0_88], %172 {strides = array<i32>} : memref<4x8x8xbf16, #tpu.memory_space<vmem>>, vector<1x8x8xbf16>,
      %173 = vector.extract_strided_slice %114 {offsets = [0, 56], sizes = [8, 8], strides = [1, 1]} : vector<8x96xf32> to vector<8x8xf32>
      %174 = arith.truncf %173 : vector<8x8xf32> to vector<8x8xbf16>
      %c3_89 = arith.constant 3 : index
      %c0_90 = arith.constant 0 : index
      %c0_91 = arith.constant 0 : index
      %175 = vector.load %arg17[%c3_89, %c0_90, %c0_91] : memref<4x8x8xbf16, #tpu.memory_space<vmem>>, vector<1x8x8xbf16>
      %176 = vector.shape_cast %175 : vector<1x8x8xbf16> to vector<8x8xbf16>
      %177 = vector.shape_cast %174 : vector<8x8xbf16> to vector<1x8x8xbf16>
      tpu.vector_store %arg17[%c3_89, %c0_90, %c0_91], %177 {strides = array<i32>} : memref<4x8x8xbf16, #tpu.memory_space<vmem>>, vector<1x8x8xbf16>,
      %178 = vector.extract_strided_slice %114 {offsets = [0, 88], sizes = [8, 8], strides = [1, 1]} : vector<8x96xf32> to vector<8x8xf32>
      %179 = arith.truncf %178 : vector<8x8xf32> to vector<8x8xbf16>
      %c3_92 = arith.constant 3 : index
      %c0_93 = arith.constant 0 : index
      %c0_94 = arith.constant 0 : index
      %180 = vector.load %arg18[%c3_92, %c0_93, %c0_94] : memref<4x8x8xbf16, #tpu.memory_space<vmem>>, vector<1x8x8xbf16>
      %181 = vector.shape_cast %180 : vector<1x8x8xbf16> to vector<8x8xbf16>
      %182 = vector.shape_cast %179 : vector<8x8xbf16> to vector<1x8x8xbf16>
      tpu.vector_store %arg18[%c3_92, %c0_93, %c0_94], %182 {strides = array<i32>} : memref<4x8x8xbf16, #tpu.memory_space<vmem>>, vector<1x8x8xbf16>,
    } else {
    }
    %c8_i32 = arith.constant 8 : i32
    %3 = arith.muli %arg1, %c8_i32 : i32
    %4 = tpu.assume_multiple %3, 8 : i32
    %c0 = arith.constant 0 : index
    %5 = arith.index_cast %4 : i32 to index
    %c0_1 = arith.constant 0 : index
    %6 = vector.load %arg16[%c0, %5, %c0_1] : memref<4x8x8xbf16, #tpu.memory_space<vmem>>, vector<4x8x8xbf16>
    %c0_2 = arith.constant 0 : index
    %c0_3 = arith.constant 0 : index
    %c0_4 = arith.constant 0 : index
    %7 = vector.load %arg17[%c0_2, %c0_3, %c0_4] : memref<4x8x8xbf16, #tpu.memory_space<vmem>>, vector<4x8x8xbf16>
    %c0_5 = arith.constant 0 : index
    %c0_6 = arith.constant 0 : index
    %c0_7 = arith.constant 0 : index
    %8 = vector.load %arg18[%c0_5, %c0_6, %c0_7] : memref<4x8x8xbf16, #tpu.memory_space<vmem>>, vector<4x8x8xbf16>
    "tpu.trace_start"() <{level = 10 : i32, message = "hqd,hkd->hqk"}> : () -> ()
    %cst = arith.constant dense<0.000000e+00> : vector<4x8x8xf32>
    %9 = tpu.matmul %6, %7, %cst {dimension_numbers = #tpu.dot_dimension_numbers<[2], [2], [1], [1], [0, 0, 0, 1, 1, 1], [0], [0]>} : vector<4x8x8xbf16>, vector<4x8x8xbf16>, vector<4x8x8xf32> -> vector<4x8x8xf32>
    "tpu.trace_stop"() : () -> ()
    %cst_8 = arith.constant dense<0xFF800000> : vector<4x8xf32>
    %10 = vector.multi_reduction <maximumf>, %9, %cst_8 [2] : vector<4x8x8xf32> to vector<4x8xf32>
    %11 = vector.shape_cast %10 : vector<4x8xf32> to vector<4x8x1xf32>
    %12 = vector.broadcast %11 : vector<4x8x1xf32> to vector<4x8x8xf32>
    %13 = arith.subf %9, %12 : vector<4x8x8xf32>
    %14 = math.exp %13 : vector<4x8x8xf32>
    %cst_9 = arith.constant dense<0.000000e+00> : vector<4x8xf32>
    %15 = vector.multi_reduction <add>, %14, %cst_9 [2] : vector<4x8x8xf32> to vector<4x8xf32>
    %16 = vector.shape_cast %15 : vector<4x8xf32> to vector<4x8x1xf32>
    %17 = tpu.reciprocal %16 {approx = true} : vector<4x8x1xf32> -> vector<4x8x1xf32>
    %18 = vector.broadcast %17 : vector<4x8x1xf32> to vector<4x8x8xf32>
    %19 = arith.mulf %14, %18 : vector<4x8x8xf32>
    %20 = arith.truncf %19 : vector<4x8x8xf32> to vector<4x8x8xbf16>
    "tpu.trace_start"() <{level = 10 : i32, message = "hqk,hkd->hqd"}> : () -> ()
    %cst_10 = arith.constant dense<0.000000e+00> : vector<4x8x8xf32>
    %21 = tpu.matmul %20, %8, %cst_10 {dimension_numbers = #tpu.dot_dimension_numbers<[2], [1], [1], [2], [0, 0, 0, 1, 1, 2], [0], [0]>} : vector<4x8x8xbf16>, vector<4x8x8xbf16>, vector<4x8x8xf32> -> vector<4x8x8xf32>
    "tpu.trace_stop"() : () -> ()
    %22 = vector.extract_strided_slice %21 {offsets = [0, 0, 0], sizes = [1, 8, 8], strides = [1, 1, 1]} : vector<4x8x8xf32> to vector<1x8x8xf32>
    %23 = vector.shape_cast %22 : vector<1x8x8xf32> to vector<8x8xf32>
    %24 = vector.extract_strided_slice %21 {offsets = [1, 0, 0], sizes = [1, 8, 8], strides = [1, 1, 1]} : vector<4x8x8xf32> to vector<1x8x8xf32>
    %25 = vector.shape_cast %24 : vector<1x8x8xf32> to vector<8x8xf32>
    %26 = vector.extract_strided_slice %21 {offsets = [2, 0, 0], sizes = [1, 8, 8], strides = [1, 1, 1]} : vector<4x8x8xf32> to vector<1x8x8xf32>
    %27 = vector.shape_cast %26 : vector<1x8x8xf32> to vector<8x8xf32>
    %28 = vector.extract_strided_slice %21 {offsets = [3, 0, 0], sizes = [1, 8, 8], strides = [1, 1, 1]} : vector<4x8x8xf32> to vector<1x8x8xf32>
    %29 = vector.shape_cast %28 : vector<1x8x8xf32> to vector<8x8xf32>
    %30 = tpu.concatenate %23, %25, %27, %29 in 1 : vector<8x8xf32>, vector<8x8xf32>, vector<8x8xf32>, vector<8x8xf32> -> vector<8x32xf32>
    %31 = arith.truncf %30 : vector<8x32xf32> to vector<8x32xbf16>
    %c0_11 = arith.constant 0 : index
    %c0_12 = arith.constant 0 : index
    %32 = vector.load %arg5[%c0_11, %c0_12] : memref<32x32xbf16, #tpu.memory_space<vmem>>, vector<32x32xbf16>
    %cst_13 = arith.constant dense<0.000000e+00> : vector<8x32xf32>
    %33 = tpu.matmul %31, %32, %cst_13 {dimension_numbers = #tpu.dot_dimension_numbers<[1], [0], [0], [1], [0, 0, 1, 1], [], []>} : vector<8x32xbf16>, vector<32x32xbf16>, vector<8x32xf32> -> vector<8x32xf32>
    %c0_14 = arith.constant 0 : index
    %c0_15 = arith.constant 0 : index
    %34 = vector.load %arg6[%c0_14, %c0_15] : memref<1x32xf32, #tpu.memory_space<vmem>>, vector<1x32xf32>
    %35 = vector.broadcast %34 : vector<1x32xf32> to vector<8x32xf32>
    %36 = arith.addf %33, %35 : vector<8x32xf32>
    %c0_16 = arith.constant 0 : index
    %37 = arith.index_cast %4 : i32 to index
    %c0_17 = arith.constant 0 : index
    %38 = vector.load %arg2[%c0_16, %37, %c0_17] : memref<1x8x32xf32, #tpu.memory_space<vmem>>, vector<1x8x32xf32>
    %39 = vector.shape_cast %38 : vector<1x8x32xf32> to vector<8x32xf32>
    %40 = arith.addf %39, %36 : vector<8x32xf32>
    %c0_18 = arith.constant 0 : index
    %c0_19 = arith.constant 0 : index
    %41 = vector.load %arg9[%c0_18, %c0_19] : memref<1x32xf32, #tpu.memory_space<vmem>>, vector<1x32xf32>
    %c0_20 = arith.constant 0 : index
    %c0_21 = arith.constant 0 : index
    %42 = vector.load %arg10[%c0_20, %c0_21] : memref<1x32xf32, #tpu.memory_space<vmem>>, vector<1x32xf32>
    %cst_22 = arith.constant dense<0.000000e+00> : vector<8xf32>
    %43 = vector.multi_reduction <add>, %40, %cst_22 [1] : vector<8x32xf32> to vector<8xf32>
    %44 = vector.shape_cast %43 : vector<8xf32> to vector<8x1xf32>
    %cst_23 = arith.constant 3.200000e+01 : f32
    %45 = vector.broadcast %cst_23 : f32 to vector<8x1xf32>
    %46 = arith.divf %44, %45 : vector<8x1xf32>
    %47 = vector.broadcast %46 : vector<8x1xf32> to vector<8x32xf32>
    %48 = arith.subf %40, %47 : vector<8x32xf32>
    %49 = arith.mulf %48, %48 : vector<8x32xf32>
    %cst_24 = arith.constant dense<0.000000e+00> : vector<8xf32>
    %50 = vector.multi_reduction <add>, %49, %cst_24 [1] : vector<8x32xf32> to vector<8xf32>
    %51 = vector.shape_cast %50 : vector<8xf32> to vector<8x1xf32>
    %cst_25 = arith.constant 3.200000e+01 : f32
    %52 = vector.broadcast %cst_25 : f32 to vector<8x1xf32>
    %53 = arith.divf %51, %52 : vector<8x1xf32>
    %54 = vector.broadcast %46 : vector<8x1xf32> to vector<8x32xf32>
    %55 = arith.subf %40, %54 : vector<8x32xf32>
    %cst_26 = arith.constant 9.99999974E-6 : f32
    %56 = vector.broadcast %cst_26 : f32 to vector<8x1xf32>
    %57 = arith.addf %53, %56 : vector<8x1xf32>
    %58 = math.rsqrt %57 : vector<8x1xf32>
    %59 = vector.broadcast %58 : vector<8x1xf32> to vector<8x32xf32>
    %60 = arith.mulf %55, %59 : vector<8x32xf32>
    %61 = vector.broadcast %41 : vector<1x32xf32> to vector<8x32xf32>
    %62 = arith.mulf %60, %61 : vector<8x32xf32>
    %63 = vector.broadcast %42 : vector<1x32xf32> to vector<8x32xf32>
    %64 = arith.addf %62, %63 : vector<8x32xf32>
    %65 = arith.truncf %64 : vector<8x32xf32> to vector<8x32xbf16>
    %c0_27 = arith.constant 0 : index
    %c0_28 = arith.constant 0 : index
    %66 = vector.load %arg11[%c0_27, %c0_28] : memref<32x64xbf16, #tpu.memory_space<vmem>>, vector<32x64xbf16>
    %cst_29 = arith.constant dense<0.000000e+00> : vector<8x64xf32>
    %67 = tpu.matmul %65, %66, %cst_29 {dimension_numbers = #tpu.dot_dimension_numbers<[1], [0], [0], [1], [0, 0, 1, 1], [], []>} : vector<8x32xbf16>, vector<32x64xbf16>, vector<8x64xf32> -> vector<8x64xf32>
    %c0_30 = arith.constant 0 : index
    %c0_31 = arith.constant 0 : index
    %68 = vector.load %arg12[%c0_30, %c0_31] : memref<1x64xf32, #tpu.memory_space<vmem>>, vector<1x64xf32>
    %69 = vector.broadcast %68 : vector<1x64xf32> to vector<8x64xf32>
    %70 = arith.addf %67, %69 : vector<8x64xf32>
    %cst_32 = arith.constant 0.000000e+00 : f32
    %71 = vector.broadcast %cst_32 : f32 to vector<8x64xf32>
    %72 = arith.maximumf %70, %71 : vector<8x64xf32>
    %73 = arith.truncf %72 : vector<8x64xf32> to vector<8x64xbf16>
    %c0_33 = arith.constant 0 : index
    %c0_34 = arith.constant 0 : index
    %74 = vector.load %arg13[%c0_33, %c0_34] : memref<64x32xbf16, #tpu.memory_space<vmem>>, vector<64x32xbf16>
    %cst_35 = arith.constant dense<0.000000e+00> : vector<8x32xf32>
    %75 = tpu.matmul %73, %74, %cst_35 {dimension_numbers = #tpu.dot_dimension_numbers<[1], [0], [0], [1], [0, 0, 1, 1], [], []>} : vector<8x64xbf16>, vector<64x32xbf16>, vector<8x32xf32> -> vector<8x32xf32>
    %c0_36 = arith.constant 0 : index
    %c0_37 = arith.constant 0 : index
    %76 = vector.load %arg14[%c0_36, %c0_37] : memref<1x32xf32, #tpu.memory_space<vmem>>, vector<1x32xf32>
    %77 = vector.broadcast %76 : vector<1x32xf32> to vector<8x32xf32>
    %78 = arith.addf %75, %77 : vector<8x32xf32>
    %79 = arith.addf %40, %78 : vector<8x32xf32>
    %c0_38 = arith.constant 0 : index
    %c0_39 = arith.constant 0 : index
    %c0_40 = arith.constant 0 : index
    %80 = vector.load %arg15[%c0_38, %c0_39, %c0_40] : memref<1x8x32xf32, #tpu.memory_space<vmem>>, vector<1x8x32xf32>
    %81 = vector.shape_cast %80 : vector<1x8x32xf32> to vector<8x32xf32>
    %82 = vector.shape_cast %79 : vector<8x32xf32> to vector<1x8x32xf32>
    tpu.vector_store %arg15[%c0_38, %c0_39, %c0_40], %82 {strides = array<i32>} : memref<1x8x32xf32, #tpu.memory_space<vmem>>, vector<1x8x32xf32>,
    return
  }
  func.func @transform_0(%arg0: i32, %arg1: i32) -> (i32, i32, i32) {
    %c0_i32 = arith.constant 0 : i32
    %c0_i32_0 = arith.constant 0 : i32
    %c0_i32_1 = arith.constant 0 : i32
    return %arg0, %c0_i32, %c0_i32_0 : i32, i32, i32
  }
  func.func @transform_1(%arg0: i32, %arg1: i32) -> (i32, i32) {
    %c0_i32 = arith.constant 0 : i32
    %c0_i32_0 = arith.constant 0 : i32
    %c0_i32_1 = arith.constant 0 : i32
    return %c0_i32, %c0_i32_0 : i32, i32
  }
  func.func @transform_2(%arg0: i32, %arg1: i32) -> (i32, i32) {
    %c0_i32 = arith.constant 0 : i32
    %c0_i32_0 = arith.constant 0 : i32
    %c0_i32_1 = arith.constant 0 : i32
    return %c0_i32, %c0_i32_0 : i32, i32
  }
  func.func @transform_3(%arg0: i32, %arg1: i32) -> (i32, i32) {
    %c0_i32 = arith.constant 0 : i32
    %c0_i32_0 = arith.constant 0 : i32
    %c0_i32_1 = arith.constant 0 : i32
    return %c0_i32, %c0_i32_0 : i32, i32
  }
  func.func @transform_4(%arg0: i32, %arg1: i32) -> (i32, i32) {
    %c0_i32 = arith.constant 0 : i32
    %c0_i32_0 = arith.constant 0 : i32
    %c0_i32_1 = arith.constant 0 : i32
    return %c0_i32, %c0_i32_0 : i32, i32
  }
  func.func @transform_5(%arg0: i32, %arg1: i32) -> (i32, i32) {
    %c0_i32 = arith.constant 0 : i32
    %c0_i32_0 = arith.constant 0 : i32
    %c0_i32_1 = arith.constant 0 : i32
    return %c0_i32, %c0_i32_0 : i32, i32
  }
  func.func @transform_6(%arg0: i32, %arg1: i32) -> (i32, i32) {
    %c0_i32 = arith.constant 0 : i32
    %c0_i32_0 = arith.constant 0 : i32
    %c0_i32_1 = arith.constant 0 : i32
    return %c0_i32, %c0_i32_0 : i32, i32
  }
  func.func @transform_7(%arg0: i32, %arg1: i32) -> (i32, i32) {
    %c0_i32 = arith.constant 0 : i32
    %c0_i32_0 = arith.constant 0 : i32
    %c0_i32_1 = arith.constant 0 : i32
    return %c0_i32, %c0_i32_0 : i32, i32
  }
  func.func @transform_8(%arg0: i32, %arg1: i32) -> (i32, i32) {
    %c0_i32 = arith.constant 0 : i32
    %c0_i32_0 = arith.constant 0 : i32
    %c0_i32_1 = arith.constant 0 : i32
    return %c0_i32, %c0_i32_0 : i32, i32
  }
  func.func @transform_9(%arg0: i32, %arg1: i32) -> (i32, i32) {
    %c0_i32 = arith.constant 0 : i32
    %c0_i32_0 = arith.constant 0 : i32
    %c0_i32_1 = arith.constant 0 : i32
    return %c0_i32, %c0_i32_0 : i32, i32
  }
  func.func @transform_10(%arg0: i32, %arg1: i32) -> (i32, i32) {
    %c0_i32 = arith.constant 0 : i32
    %c0_i32_0 = arith.constant 0 : i32
    %c0_i32_1 = arith.constant 0 : i32
    return %c0_i32, %c0_i32_0 : i32, i32
  }
  func.func @transform_11(%arg0: i32, %arg1: i32) -> (i32, i32) {
    %c0_i32 = arith.constant 0 : i32
    %c0_i32_0 = arith.constant 0 : i32
    %c0_i32_1 = arith.constant 0 : i32
    return %c0_i32, %c0_i32_0 : i32, i32
  }
  func.func @transform_12(%arg0: i32, %arg1: i32) -> (i32, i32) {
    %c0_i32 = arith.constant 0 : i32
    %c0_i32_0 = arith.constant 0 : i32
    %c0_i32_1 = arith.constant 0 : i32
    return %c0_i32, %c0_i32_0 : i32, i32
  }
  func.func @transform_13(%arg0: i32, %arg1: i32) -> (i32, i32, i32) {
    %c0_i32 = arith.constant 0 : i32
    %c0_i32_0 = arith.constant 0 : i32
    return %arg0, %arg1, %c0_i32 : i32, i32, i32
  }
}

</mosaic_0001>

<llo_original>
// kernel: tpu_custom_call.1
$region0: #{tpu_custom_call.1}
  #allocation0 [shape = 'u32[]', space=smem, size = 0x4, offset = 0x4, fixed_abs, tag = 'smem constant byte address 0x4 - core index']
  #allocation1 [shape = 'u32[144,128]{1,0:T(1,128)}', space=vmem, size = 0x12000, scoped, tag = 'internal scratch']
  #allocation2 [shape = 'bf16[4,8,8]{2,1,0:T(8,128)(2,1)}', space=vmem, size = 0x2000, scoped, tag = 'scratch operand']
  #allocation3 [shape = 'bf16[4,8,8]{2,1,0:T(8,128)(2,1)}', space=vmem, size = 0x2000, scoped, tag = 'scratch operand']
  #allocation4 [shape = 'bf16[4,8,8]{2,1,0:T(8,128)(2,1)}', space=vmem, size = 0x2000, scoped, tag = 'scratch operand']
  %s0 = inlined_call_operand.vmem [shape: f32[2,8,32], index: 0, kind: input, shape index: {}]
  %s1 = inlined_call_operand.vmem [shape: bf16[32,96], index: 1, kind: input, shape index: {}]
  %s2 = inlined_call_operand.vmem [shape: f32[1,96], index: 2, kind: input, shape index: {}]
  %s3 = inlined_call_operand.vmem [shape: bf16[32,32], index: 3, kind: input, shape index: {}]
  %s4 = inlined_call_operand.vmem [shape: f32[1,32], index: 4, kind: input, shape index: {}]
  %s5 = inlined_call_operand.hbm [shape: f32[1,32], index: 5, kind: input, shape index: {}]
  %s6 = inlined_call_operand.hbm [shape: f32[1,32], index: 6, kind: input, shape index: {}]
  %s7 = inlined_call_operand.hbm [shape: f32[1,32], index: 7, kind: input, shape index: {}]
  %s8 = inlined_call_operand.hbm [shape: f32[1,32], index: 8, kind: input, shape index: {}]
  %s9 = inlined_call_operand.vmem [shape: bf16[32,64], index: 9, kind: input, shape index: {}]
  %s10 = inlined_call_operand.vmem [shape: f32[1,64], index: 10, kind: input, shape index: {}]
  %s11 = inlined_call_operand.vmem [shape: bf16[64,32], index: 11, kind: input, shape index: {}]
  %s12 = inlined_call_operand.vmem [shape: f32[1,32], index: 12, kind: input, shape index: {}]
  %s13 = inlined_call_operand.hbm [shape: f32[2,8,32], index: 13, kind: output, shape index: {}]
  %s14 = sld [smem:[#allocation0]]
  $region105: #{tpu_custom_call.1} parent=0
    _
  %s16 = ssub.s32 1, %s14
  %s17 = scalar_select 0, %s16, %s14
  $region1: #{tpu_custom_call.1} parent=0
    #allocation5 [shape = 'u8[512]{0}', space=vmem, size = 0x400, scoped, tag = 'input window, operand 5, single buffered']
    #allocation6 [shape = 's32[2]{0}', space=sflag, size = 0x8, scoped, tag = 'scoped memory for tpu_custom_call.1']
    #allocation7 [shape = 's32[2]{0}', space=sflag, size = 0x8, scoped, tag = 'scoped memory for tpu_custom_call.1']
    #allocation8 [shape = 'u8[512]{0}', space=vmem, size = 0x400, scoped, tag = 'input window, operand 6, single buffered']
    #allocation9 [shape = 's32[1]{0}', space=sflag, size = 0x4, scoped, tag = 'scoped memory for tpu_custom_call.1']
    #allocation10 [shape = 'u8[512]{0}', space=vmem, size = 0x400, scoped, tag = 'input window, operand 7, single buffered']
    #allocation11 [shape = 'u8[512]{0}', space=vmem, size = 0x400, scoped, tag = 'input window, operand 8, single buffered']
    #allocation12 [shape = 's32[1]{0}', space=sflag, size = 0x4, scoped, tag = 'scoped memory for tpu_custom_call.1']
    #allocation13 [shape = 'u8[8192]{0}', space=vmem, size = 0x2000, scoped, tag = 'output window, operand 0']
    %18 = vsyncpa [#allocation6], 0
    %19 = vsyncpa [#allocation9], 0
    %20 = vsyncpa [#allocation12], 0
    %21 = vsyncpa [#allocation7], 0
    %s22 = scalar_lea.sflag [#allocation7], 1
    %23 = vsyncpa %s22, 0
    loop: start=0, step=1, limit=4
    $region2: #{tpu_custom_call.1} parent=1 // loop_pre_header
      _
    $region3: #{tpu_custom_call.1} parent=1 // loop_header
      %s25 = sphi 0, %s29
      %p26 = scmp.ge.s32.totalorder %s25, 4
      %s32 = sphi 0, %s44
      %s33 = sphi 0, %s40
      %s34 = sphi 0, %s32
      %s35 = sphi 0, %s33
      %s36 = sphi 0, %s34
      %s37 = sphi 0, %s35
      %s47 = sphi 0, %s49
      %s50 = sphi 0, %s47
      %s51 = sphi 0, %s50
      %s67 = sphi 0, %s51
      %s71 = sphi 0, %s71
      %s73 = sphi 0, %s71
      %s74 = sphi 0, %s73
      %s88 = sphi 0, %s74
      %s92 = sphi 0, %s92
      %s94 = sphi 0, %s92
      %s95 = sphi 0, %s94
      %s109 = sphi 0, %s95
      %s113 = sphi 0, %s113
      %s115 = sphi 0, %s113
      %s116 = sphi 0, %s115
      %s130 = sphi 0, %s116
      %s134 = sphi 0, %s134
      %s136 = sphi 0, %s134
      %s137 = sphi 0, %s136
      %s151 = sphi 0, %s137
      %s155 = sphi 0, %s155
      %s157 = sphi 0, %s155
      %s158 = sphi 0, %s157
      %s172 = sphi 0, %s158
      %s176 = sphi 0, %s176
      %s178 = sphi 0, %s176
      %s179 = sphi 0, %s178
      %s193 = sphi 0, %s179
      %s197 = sphi 0, %s197
      %s199 = sphi 0, %s197
      %s200 = sphi 0, %s199
      %s214 = sphi 0, %s200
      %s218 = sphi 0, %s218
      %s220 = sphi 0, %s218
      %s221 = sphi 0, %s220
      %s235 = sphi 0, %s221
      %s239 = sphi 0, %s239
      %s241 = sphi 0, %s239
      %s242 = sphi 0, %s241
      %s256 = sphi 0, %s242
      %s260 = sphi 0, %s260
      %s262 = sphi 0, %s260
      %s263 = sphi 0, %s262
      %s277 = sphi 0, %s263
      %s281 = sphi 0, %s281
      %s283 = sphi 0, %s281
      %s284 = sphi 0, %s283
      %s298 = sphi 0, %s284
      %s302 = sphi 0, %s302
      %s304 = sphi 0, %s302
      %s305 = sphi 0, %s304
      %s319 = sphi 0, %s305
      %s327 = sphi 0, %s329
      %s330 = sphi 0, %s327
      %s331 = sphi 0, %s330
      %s347 = sphi 0, %s331
    $region4: #{tpu_custom_call.1} parent=1 // loop_header_branch
      %28 = sbr.rel (%p26) target = $region8
    $region5: #{tpu_custom_call.1} parent=1 // loop_body
      %s30 = ssub.s32 %s25, 1
      %s31 = ssub.s32 %s25, 2
      %s38 = sadd.s32 1, %s33
      %p39 = scmp.ge.s32.totalorder %s38, 1
      %s40 = scalar_select %p39, 0, %s38
      %s41 = sadd.s32 1, %s32
      %s42 = scalar_select %p39, %s41, %s32
      %p43 = scmp.ge.s32.totalorder %s42, 2
      %s44 = scalar_select %p43, 0, %s42
      %s45 = ssub.s32 %s32, %s44
      %p46 = scmp.eq.s32.totalorder %s45, 0
      %s48 = sadd.s32 %s47, 1
      %s49 = scalar_select %p46, %s47, %s48
      %p52 = pneg %p46
      %p53 = scmp.eq.s32.totalorder %s25, 1
      %p54 = por %p52, %p53
      %p55 = scmp.ne.s32.totalorder %s47, %s50
      %p56 = scmp.eq.s32.totalorder %s25, 0
      %p57 = por %p55, %p56
      %p58 = scmp.ne.s32.totalorder %s47, %s50
      %p59 = scmp.eq.s32.totalorder %s30, 1
      %p60 = por %p58, %p59
      %p61 = scmp.ne.s32.totalorder %s50, %s51
      %p62 = scmp.eq.s32.totalorder %s30, 0
      %p63 = por %p61, %p62
      %p64 = scmp.ne.s32.totalorder %s50, %s51
      %p65 = scmp.eq.s32.totalorder %s31, 1
      %p66 = por %p64, %p65
      %p68 = scmp.ne.s32.totalorder %s51, %s67
      %p69 = scmp.eq.s32.totalorder %s31, 0
      %p70 = por %p68, %p69
      %s72 = sadd.s32 %s71, 1
      %p75 = scmp.eq.s32.totalorder %s25, 1
      %p76 = scmp.ne.s32.totalorder %s71, %s73
      %p77 = scmp.eq.s32.totalorder %s25, 0
      %p78 = por %p76, %p77
      %p79 = scmp.ne.s32.totalorder %s71, %s73
      %p80 = scmp.eq.s32.totalorder %s30, 1
      %p81 = por %p79, %p80
      %p82 = scmp.ne.s32.totalorder %s73, %s74
      %p83 = scmp.eq.s32.totalorder %s30, 0
      %p84 = por %p82, %p83
      %p85 = scmp.ne.s32.totalorder %s73, %s74
      %p86 = scmp.eq.s32.totalorder %s31, 1
      %p87 = por %p85, %p86
      %p89 = scmp.ne.s32.totalorder %s74, %s88
      %p90 = scmp.eq.s32.totalorder %s31, 0
      %p91 = por %p89, %p90
      %s93 = sadd.s32 %s92, 1
      %p96 = scmp.eq.s32.totalorder %s25, 1
      %p97 = scmp.ne.s32.totalorder %s92, %s94
      %p98 = scmp.eq.s32.totalorder %s25, 0
      %p99 = por %p97, %p98
      %p100 = scmp.ne.s32.totalorder %s92, %s94
      %p101 = scmp.eq.s32.totalorder %s30, 1
      %p102 = por %p100, %p101
      %p103 = scmp.ne.s32.totalorder %s94, %s95
      %p104 = scmp.eq.s32.totalorder %s30, 0
      %p105 = por %p103, %p104
      %p106 = scmp.ne.s32.totalorder %s94, %s95
      %p107 = scmp.eq.s32.totalorder %s31, 1
      %p108 = por %p106, %p107
      %p110 = scmp.ne.s32.totalorder %s95, %s109
      %p111 = scmp.eq.s32.totalorder %s31, 0
      %p112 = por %p110, %p111
      %s114 = sadd.s32 %s113, 1
      %p117 = scmp.eq.s32.totalorder %s25, 1
      %p118 = scmp.ne.s32.totalorder %s113, %s115
      %p119 = scmp.eq.s32.totalorder %s25, 0
      %p120 = por %p118, %p119
      %p121 = scmp.ne.s32.totalorder %s113, %s115
      %p122 = scmp.eq.s32.totalorder %s30, 1
      %p123 = por %p121, %p122
      %p124 = scmp.ne.s32.totalorder %s115, %s116
      %p125 = scmp.eq.s32.totalorder %s30, 0
      %p126 = por %p124, %p125
      %p127 = scmp.ne.s32.totalorder %s115, %s116
      %p128 = scmp.eq.s32.totalorder %s31, 1
      %p129 = por %p127, %p128
      %p131 = scmp.ne.s32.totalorder %s116, %s130
      %p132 = scmp.eq.s32.totalorder %s31, 0
      %p133 = por %p131, %p132
      %s135 = sadd.s32 %s134, 1
      %p138 = scmp.eq.s32.totalorder %s25, 1
      %p139 = scmp.ne.s32.totalorder %s134, %s136
      %p140 = scmp.eq.s32.totalorder %s25, 0
      %p141 = por %p139, %p140
      %p142 = scmp.ne.s32.totalorder %s134, %s136
      %p143 = scmp.eq.s32.totalorder %s30, 1
      %p144 = por %p142, %p143
      %p145 = scmp.ne.s32.totalorder %s136, %s137
      %p146 = scmp.eq.s32.totalorder %s30, 0
      %p147 = por %p145, %p146
      %p148 = scmp.ne.s32.totalorder %s136, %s137
      %p149 = scmp.eq.s32.totalorder %s31, 1
      %p150 = por %p148, %p149
      %p152 = scmp.ne.s32.totalorder %s137, %s151
      %p153 = scmp.eq.s32.totalorder %s31, 0
      %p154 = por %p152, %p153
      %s156 = sadd.s32 %s155, 1
      %p159 = scmp.eq.s32.totalorder %s25, 1
      %p160 = scmp.ne.s32.totalorder %s155, %s157
      %p161 = scmp.eq.s32.totalorder %s25, 0
      %p162 = por %p160, %p161
      %p163 = scmp.ne.s32.totalorder %s155, %s157
      %p164 = scmp.eq.s32.totalorder %s30, 1
      %p165 = por %p163, %p164
      %p166 = scmp.ne.s32.totalorder %s157, %s158
      %p167 = scmp.eq.s32.totalorder %s30, 0
      %p168 = por %p166, %p167
      %p169 = scmp.ne.s32.totalorder %s157, %s158
      %p170 = scmp.eq.s32.totalorder %s31, 1
      %p171 = por %p169, %p170
      %p173 = scmp.ne.s32.totalorder %s158, %s172
      %p174 = scmp.eq.s32.totalorder %s31, 0
      %p175 = por %p173, %p174
      %s177 = sadd.s32 %s176, 1
      %p180 = scmp.eq.s32.totalorder %s25, 1
      %p181 = scmp.ne.s32.totalorder %s176, %s178
      %p182 = scmp.eq.s32.totalorder %s25, 0
      %p183 = por %p181, %p182
      %p184 = scmp.ne.s32.totalorder %s176, %s178
      %p185 = scmp.eq.s32.totalorder %s30, 1
      %p186 = por %p184, %p185
      %p187 = scmp.ne.s32.totalorder %s178, %s179
      %p188 = scmp.eq.s32.totalorder %s30, 0
      %p189 = por %p187, %p188
      %p190 = scmp.ne.s32.totalorder %s178, %s179
      %p191 = scmp.eq.s32.totalorder %s31, 1
      %p192 = por %p190, %p191
      %p194 = scmp.ne.s32.totalorder %s179, %s193
      %p195 = scmp.eq.s32.totalorder %s31, 0
      %p196 = por %p194, %p195
      %s198 = sadd.s32 %s197, 1
      %p201 = scmp.eq.s32.totalorder %s25, 1
      %p202 = scmp.ne.s32.totalorder %s197, %s199
      %p203 = scmp.eq.s32.totalorder %s25, 0
      %p204 = por %p202, %p203
      %p205 = scmp.ne.s32.totalorder %s197, %s199
      %p206 = scmp.eq.s32.totalorder %s30, 1
      %p207 = por %p205, %p206
      %p208 = scmp.ne.s32.totalorder %s199, %s200
      %p209 = scmp.eq.s32.totalorder %s30, 0
      %p210 = por %p208, %p209
      %p211 = scmp.ne.s32.totalorder %s199, %s200
      %p212 = scmp.eq.s32.totalorder %s31, 1
      %p213 = por %p211, %p212
      %p215 = scmp.ne.s32.totalorder %s200, %s214
      %p216 = scmp.eq.s32.totalorder %s31, 0
      %p217 = por %p215, %p216
      %s219 = sadd.s32 %s218, 1
      %p222 = scmp.eq.s32.totalorder %s25, 1
      %p223 = scmp.ne.s32.totalorder %s218, %s220
      %p224 = scmp.eq.s32.totalorder %s25, 0
      %p225 = por %p223, %p224
      %p226 = scmp.ne.s32.totalorder %s218, %s220
      %p227 = scmp.eq.s32.totalorder %s30, 1
      %p228 = por %p226, %p227
      %p229 = scmp.ne.s32.totalorder %s220, %s221
      %p230 = scmp.eq.s32.totalorder %s30, 0
      %p231 = por %p229, %p230
      %p232 = scmp.ne.s32.totalorder %s220, %s221
      %p233 = scmp.eq.s32.totalorder %s31, 1
      %p234 = por %p232, %p233
      %p236 = scmp.ne.s32.totalorder %s221, %s235
      %p237 = scmp.eq.s32.totalorder %s31, 0
      %p238 = por %p236, %p237
      %s240 = sadd.s32 %s239, 1
      %p243 = scmp.eq.s32.totalorder %s25, 1
      %p244 = scmp.ne.s32.totalorder %s239, %s241
      %p245 = scmp.eq.s32.totalorder %s25, 0
      %p246 = por %p244, %p245
      %p247 = scmp.ne.s32.totalorder %s239, %s241
      %p248 = scmp.eq.s32.totalorder %s30, 1
      %p249 = por %p247, %p248
      %p250 = scmp.ne.s32.totalorder %s241, %s242
      %p251 = scmp.eq.s32.totalorder %s30, 0
      %p252 = por %p250, %p251
      %p253 = scmp.ne.s32.totalorder %s241, %s242
      %p254 = scmp.eq.s32.totalorder %s31, 1
      %p255 = por %p253, %p254
      %p257 = scmp.ne.s32.totalorder %s242, %s256
      %p258 = scmp.eq.s32.totalorder %s31, 0
      %p259 = por %p257, %p258
      %s261 = sadd.s32 %s260, 1
      %p264 = scmp.eq.s32.totalorder %s25, 1
      %p265 = scmp.ne.s32.totalorder %s260, %s262
      %p266 = scmp.eq.s32.totalorder %s25, 0
      %p267 = por %p265, %p266
      %p268 = scmp.ne.s32.totalorder %s260, %s262
      %p269 = scmp.eq.s32.totalorder %s30, 1
      %p270 = por %p268, %p269
      %p271 = scmp.ne.s32.totalorder %s262, %s263
      %p272 = scmp.eq.s32.totalorder %s30, 0
      %p273 = por %p271, %p272
      %p274 = scmp.ne.s32.totalorder %s262, %s263
      %p275 = scmp.eq.s32.totalorder %s31, 1
      %p276 = por %p274, %p275
      %p278 = scmp.ne.s32.totalorder %s263, %s277
      %p279 = scmp.eq.s32.totalorder %s31, 0
      %p280 = por %p278, %p279
      %s282 = sadd.s32 %s281, 1
      %p285 = scmp.eq.s32.totalorder %s25, 1
      %p286 = scmp.ne.s32.totalorder %s281, %s283
      %p287 = scmp.eq.s32.totalorder %s25, 0
      %p288 = por %p286, %p287
      %p289 = scmp.ne.s32.totalorder %s281, %s283
      %p290 = scmp.eq.s32.totalorder %s30, 1
      %p291 = por %p289, %p290
      %p292 = scmp.ne.s32.totalorder %s283, %s284
      %p293 = scmp.eq.s32.totalorder %s30, 0
      %p294 = por %p292, %p293
      %p295 = scmp.ne.s32.totalorder %s283, %s284
      %p296 = scmp.eq.s32.totalorder %s31, 1
      %p297 = por %p295, %p296
      %p299 = scmp.ne.s32.totalorder %s284, %s298
      %p300 = scmp.eq.s32.totalorder %s31, 0
      %p301 = por %p299, %p300
      %s303 = sadd.s32 %s302, 1
      %p306 = scmp.eq.s32.totalorder %s25, 1
      %p307 = scmp.ne.s32.totalorder %s302, %s304
      %p308 = scmp.eq.s32.totalorder %s25, 0
      %p309 = por %p307, %p308
      %p310 = scmp.ne.s32.totalorder %s302, %s304
      %p311 = scmp.eq.s32.totalorder %s30, 1
      %p312 = por %p310, %p311
      %p313 = scmp.ne.s32.totalorder %s304, %s305
      %p314 = scmp.eq.s32.totalorder %s30, 0
      %p315 = por %p313, %p314
      %p316 = scmp.ne.s32.totalorder %s304, %s305
      %p317 = scmp.eq.s32.totalorder %s31, 1
      %p318 = por %p316, %p317
      %p320 = scmp.ne.s32.totalorder %s305, %s319
      %p321 = scmp.eq.s32.totalorder %s31, 0
      %p322 = por %p320, %p321
      %s323 = ssub.s32 %s32, %s44
      %s324 = ssub.s32 %s33, %s40
      %s325 = sor.u32 %s323, %s324
      %p326 = scmp.eq.s32.totalorder %s325, 0
      %s328 = sadd.s32 %s327, 1
      %s329 = scalar_select %p326, %s327, %s328
      %p332 = pneg %p326
      %p333 = scmp.eq.s32.totalorder %s25, 1
      %p334 = por %p332, %p333
      %p335 = scmp.ne.s32.totalorder %s327, %s330
      %p336 = scmp.eq.s32.totalorder %s25, 0
      %p337 = por %p335, %p336
      %p338 = scmp.ne.s32.totalorder %s327, %s330
      %p339 = scmp.eq.s32.totalorder %s30, 1
      %p340 = por %p338, %p339
      %p341 = scmp.ne.s32.totalorder %s330, %s331
      %p342 = scmp.eq.s32.totalorder %s30, 0
      %p343 = por %p341, %p342
      %p344 = scmp.ne.s32.totalorder %s330, %s331
      %p345 = scmp.eq.s32.totalorder %s31, 1
      %p346 = por %p344, %p345
      %p348 = scmp.ne.s32.totalorder %s331, %s347
      %p349 = scmp.eq.s32.totalorder %s31, 0
      %p350 = por %p348, %p349
      %p351 = scmp.le.s32.totalorder 1, %s25
      %p352 = scmp.lt.s32.totalorder %s25, 3
      %p353 = pnand %p351, %p352
      %p354 = pneg %p353
      // Predicated region
      $region9: #{tpu_custom_call.1} parent=5 // pred_check
        _
      $region10: #{tpu_custom_call.1} parent=5 // pred_check_branch
        %356 = sbr.rel (%p353) target = $region12
      $region11: #{tpu_custom_call.1} parent=5 // pred_region
        %s357 = ssub.s32 %s25, 1
        // Predicated region
        $region13: #{tpu_custom_call.1} parent=11 // pred_check
          %p358 = pneg %p84
        $region14: #{tpu_custom_call.1} parent=11 // pred_check_branch
          %360 = sbr.rel (%p358) target = $region16
        $region15: #{tpu_custom_call.1} parent=11 // pred_region
          _
        $region16: #{tpu_custom_call.1} parent=11 // pred_fallthru
          _
        // Predicated region
        $region17: #{tpu_custom_call.1} parent=11 // pred_check
          %p361 = pneg %p105
        $region18: #{tpu_custom_call.1} parent=11 // pred_check_branch
          %363 = sbr.rel (%p361) target = $region20
        $region19: #{tpu_custom_call.1} parent=11 // pred_region
          _
        $region20: #{tpu_custom_call.1} parent=11 // pred_fallthru
          _
        // Predicated region
        $region21: #{tpu_custom_call.1} parent=11 // pred_check
          %p364 = pneg %p126
        $region22: #{tpu_custom_call.1} parent=11 // pred_check_branch
          %366 = sbr.rel (%p364) target = $region24
        $region23: #{tpu_custom_call.1} parent=11 // pred_region
          _
        $region24: #{tpu_custom_call.1} parent=11 // pred_fallthru
          _
        // Predicated region
        $region25: #{tpu_custom_call.1} parent=11 // pred_check
          %p367 = pneg %p147
        $region26: #{tpu_custom_call.1} parent=11 // pred_check_branch
          %369 = sbr.rel (%p367) target = $region28
        $region27: #{tpu_custom_call.1} parent=11 // pred_region
          _
        $region28: #{tpu_custom_call.1} parent=11 // pred_fallthru
          _
        // Predicated region
        $region29: #{tpu_custom_call.1} parent=11 // pred_check
          %p370 = pneg %p168
        $region30: #{tpu_custom_call.1} parent=11 // pred_check_branch
          %372 = sbr.rel (%p370) target = $region32
        $region31: #{tpu_custom_call.1} parent=11 // pred_region
          %s374 = ssub.s32 16, 16
          %375 = vsyncadd [#allocation6], %s374
          %s377 = sshll.u32 [#allocation5], 4
          %s378 = int_to_ptr.vmem [resolvable:$true] %s377
          %380 = dma.hbm_to_vmem [thread:$0]  %s5, 16, %s378, [#allocation6]
        $region32: #{tpu_custom_call.1} parent=11 // pred_fallthru
          _
        // Predicated region
        $region33: #{tpu_custom_call.1} parent=11 // pred_check
          %p381 = pneg %p189
        $region34: #{tpu_custom_call.1} parent=11 // pred_check_branch
          %383 = sbr.rel (%p381) target = $region36
        $region35: #{tpu_custom_call.1} parent=11 // pred_region
          %s385 = ssub.s32 16, 16
          %386 = vsyncadd [#allocation9], %s385
          %s388 = sshll.u32 [#allocation8], 4
          %s389 = int_to_ptr.vmem [resolvable:$true] %s388
          %391 = dma.hbm_to_vmem [thread:$0]  %s6, 16, %s389, [#allocation9]
        $region36: #{tpu_custom_call.1} parent=11 // pred_fallthru
          _
        // Predicated region
        $region37: #{tpu_custom_call.1} parent=11 // pred_check
          %p392 = pneg %p210
        $region38: #{tpu_custom_call.1} parent=11 // pred_check_branch
          %394 = sbr.rel (%p392) target = $region40
        $region39: #{tpu_custom_call.1} parent=11 // pred_region
          %s396 = ssub.s32 16, 16
          %397 = vsyncadd [#allocation9], %s396
          %s399 = sshll.u32 [#allocation10], 4
          %s400 = int_to_ptr.vmem [resolvable:$true] %s399
          %402 = dma.hbm_to_vmem [thread:$0]  %s7, 16, %s400, [#allocation9]
        $region40: #{tpu_custom_call.1} parent=11 // pred_fallthru
          _
        // Predicated region
        $region41: #{tpu_custom_call.1} parent=11 // pred_check
          %p403 = pneg %p231
        $region42: #{tpu_custom_call.1} parent=11 // pred_check_branch
          %405 = sbr.rel (%p403) target = $region44
        $region43: #{tpu_custom_call.1} parent=11 // pred_region
          %s407 = ssub.s32 16, 16
          %408 = vsyncadd [#allocation12], %s407
          %s410 = sshll.u32 [#allocation11], 4
          %s411 = int_to_ptr.vmem [resolvable:$true] %s410
          %413 = dma.hbm_to_vmem [thread:$0]  %s8, 16, %s411, [#allocation12]
        $region44: #{tpu_custom_call.1} parent=11 // pred_fallthru
          _
        // Predicated region
        $region45: #{tpu_custom_call.1} parent=11 // pred_check
          %p414 = pneg %p252
        $region46: #{tpu_custom_call.1} parent=11 // pred_check_branch
          %416 = sbr.rel (%p414) target = $region48
        $region47: #{tpu_custom_call.1} parent=11 // pred_region
          _
        $region48: #{tpu_custom_call.1} parent=11 // pred_fallthru
          _
        // Predicated region
        $region49: #{tpu_custom_call.1} parent=11 // pred_check
          %p417 = pneg %p273
        $region50: #{tpu_custom_call.1} parent=11 // pred_check_branch
          %419 = sbr.rel (%p417) target = $region52
        $region51: #{tpu_custom_call.1} parent=11 // pred_region
          _
        $region52: #{tpu_custom_call.1} parent=11 // pred_fallthru
          _
        // Predicated region
        $region53: #{tpu_custom_call.1} parent=11 // pred_check
          %p420 = pneg %p294
        $region54: #{tpu_custom_call.1} parent=11 // pred_check_branch
          %422 = sbr.rel (%p420) target = $region56
        $region55: #{tpu_custom_call.1} parent=11 // pred_region
          _
        $region56: #{tpu_custom_call.1} parent=11 // pred_fallthru
          _
        // Predicated region
        $region57: #{tpu_custom_call.1} parent=11 // pred_check
          %p423 = pneg %p315
        $region58: #{tpu_custom_call.1} parent=11 // pred_check_branch
          %425 = sbr.rel (%p423) target = $region60
        $region59: #{tpu_custom_call.1} parent=11 // pred_region
          _
        $region60: #{tpu_custom_call.1} parent=11 // pred_fallthru
          _
      $region12: #{tpu_custom_call.1} parent=5 // pred_fallthru
        _
      %p426 = scmp.lt.s32.totalorder %s25, 2
      // Predicated region
      $region61: #{tpu_custom_call.1} parent=5 // pred_check
        %p427 = pneg %p426
      $region62: #{tpu_custom_call.1} parent=5 // pred_check_branch
        %429 = sbr.rel (%p427) target = $region64
      $region63: #{tpu_custom_call.1} parent=5 // pred_region
        // Predicated region
        $region65: #{tpu_custom_call.1} parent=63 // pred_check
          %p430 = pneg %p57
        $region66: #{tpu_custom_call.1} parent=63 // pred_check_branch
          %432 = sbr.rel (%p430) target = $region68
        $region67: #{tpu_custom_call.1} parent=63 // pred_region
          %p433 = scmp.lt.s32.totalorder %s32, 1
          %s434 = scalar_select %p433, %s32, 1
          %s435 = smul.addr %s434, 8
          %s436 = scalar_lea.vmem %s0, %s435
        $region68: #{tpu_custom_call.1} parent=63 // pred_fallthru
          _
      $region64: #{tpu_custom_call.1} parent=5 // pred_fallthru
        _
      %p437 = scmp.le.s32.totalorder 1, %s25
      %p438 = scmp.lt.s32.totalorder %s25, 3
      %p439 = pnand %p437, %p438
      %p440 = pneg %p439
      // Predicated region
      $region69: #{tpu_custom_call.1} parent=5 // pred_check
        _
      $region70: #{tpu_custom_call.1} parent=5 // pred_check_branch
        %442 = sbr.rel (%p439) target = $region72
      $region71: #{tpu_custom_call.1} parent=5 // pred_region
        %s443 = ssub.s32 %s25, 1
        // Predicated region
        $region73: #{tpu_custom_call.1} parent=71 // pred_check
          %p444 = pneg %p168
        $region74: #{tpu_custom_call.1} parent=71 // pred_check_branch
          %446 = sbr.rel (%p444) target = $region76
        $region75: #{tpu_custom_call.1} parent=71 // pred_region
          %447 = dma.done [#allocation6], 16
        $region76: #{tpu_custom_call.1} parent=71 // pred_fallthru
          _
        // Predicated region
        $region77: #{tpu_custom_call.1} parent=71 // pred_check
          %p448 = pneg %p189
        $region78: #{tpu_custom_call.1} parent=71 // pred_check_branch
          %450 = sbr.rel (%p448) target = $region80
        $region79: #{tpu_custom_call.1} parent=71 // pred_region
          %451 = dma.done [#allocation9], 16
        $region80: #{tpu_custom_call.1} parent=71 // pred_fallthru
          _
        // Predicated region
        $region81: #{tpu_custom_call.1} parent=71 // pred_check
          %p452 = pneg %p210
        $region82: #{tpu_custom_call.1} parent=71 // pred_check_branch
          %454 = sbr.rel (%p452) target = $region84
        $region83: #{tpu_custom_call.1} parent=71 // pred_region
          %455 = dma.done [#allocation9], 16
        $region84: #{tpu_custom_call.1} parent=71 // pred_fallthru
          _
        // Predicated region
        $region85: #{tpu_custom_call.1} parent=71 // pred_check
          %p456 = pneg %p231
        $region86: #{tpu_custom_call.1} parent=71 // pred_check_branch
          %458 = sbr.rel (%p456) target = $region88
        $region87: #{tpu_custom_call.1} parent=71 // pred_region
          %459 = dma.done [#allocation12], 16
        $region88: #{tpu_custom_call.1} parent=71 // pred_fallthru
          _
        %p460 = scmp.lt.s32.totalorder %s34, 1
        %s461 = scalar_select %p460, %s34, 1
        %s462 = smul.addr %s461, 8
        %s463 = scalar_lea.vmem %s0, %s462
        %p464 = pneg %p63
        %p465 = pneg %p60
        %p466 = pneg %p84
        %p467 = pneg %p81
        %p468 = pneg %p105
        %p469 = pneg %p102
        %p470 = pneg %p126
        %p471 = pneg %p123
        %p472 = pneg %p147
        %p473 = pneg %p144
        %p474 = pneg %p168
        %p475 = pneg %p165
        %p476 = pneg %p189
        %p477 = pneg %p186
        %p478 = pneg %p210
        %p479 = pneg %p207
        %p480 = pneg %p231
        %p481 = pneg %p228
        %p482 = pneg %p252
        %p483 = pneg %p249
        %p484 = pneg %p273
        %p485 = pneg %p270
        %p486 = pneg %p294
        %p487 = pneg %p291
        %p488 = pneg %p315
        %p489 = pneg %p312
        %p490 = pneg %p343
        %p491 = pneg %p340
        %s492 = sand.u32 %s330, 1
        %s493 = scalar_lea.sflag [#allocation7], %s492
        %s494 = sand.u32 %s330, 1
        %s495 = smul.addr %s494, 8
        %s496 = scalar_lea.vmem [#allocation13], %s495
        %p497 = scmp.lt.s32.totalorder %s34, 1
        %s498 = scalar_select %p497, %s34, 1
        %s499 = smul.addr %s498, 8
        %s500 = scalar_lea.vmem %s0, %s499
        %p502 = scmp.eq.s32.totalorder %s35, 0
        // Predicated region
        $region89: #{tpu_custom_call.1} parent=71 // pred_check
          %p503 = pneg %p502
        $region90: #{tpu_custom_call.1} parent=71 // pred_check_branch
          %505 = sbr.rel (%p503) target = $region92
        $region91: #{tpu_custom_call.1} parent=71 // pred_region
          %v506 = vld [vmem:[%s500] sm:$0xff]
          %v507 = vld [vmem:[#allocation5] sm:$0x1]
          %v508 = vld [vmem:[#allocation8] sm:$0x1]
          %vm509 = vcmask 261120
          %v510 = vsel %vm509, %v506, 0.0
          %511 = vadd.xlane.f32.xlu0 %v510
          %v512 = vpop.xlane.xlu0 %511
          %v513 = vrcp.pop 32.0
          %v514 = vmul.f32 %v512, %v513
          %v515 = vsub.f32 %v506, %v514
          %v516 = vmul.f32 %v515, %v515
          %v517 = vsel %vm509, %v516, 0.0
          %518 = vadd.xlane.f32.xlu0 %v517
          %v519 = vpop.xlane.xlu0 %518
          %v520 = vmul.f32 %v519, %v513
          %v521 = vadd.f32 %v520, 1e-05
          %v522 = vrsqrt.pop %v521
          %v523 = vmul.f32 %v515, %v522
          %v525 = vlaneseq
          %v526 = vshrl.u32 %v525, 7
          %v527 = vsub.s32 0, %v526
          %v528 = vrot.slane %v507, %v527
          %v530 = vmul.f32 %v523, %v528
          %v532 = vlaneseq
          %v533 = vshrl.u32 %v532, 7
          %v534 = vsub.s32 0, %v533
          %v535 = vrot.slane %v508, %v534
          %v537 = vadd.f32 %v530, %v535
          %v538 = vpack.c.bf16 %v537, %v537
          %v539 = vld [vmem:[%s1] sm:$0xf]
          %v540 = vld [vmem:[%s1 + $0x4] sm:$0xf]
          %v541 = vld [vmem:[%s1 + $0x8] sm:$0xf]
          %v542 = vld [vmem:[%s1 + $0xc] sm:$0xf]
          %v543 = vld [vmem:[%s2] sm:$0x1]
          %v545 = vlaneseq
          %v546 = vshrl.u32 %v545, 7
          %v547 = vsub.s32 0, %v546
          %v548 = vrot.slane %v543, %v547
          %v554 = vunpack.c.l.b16 %v539
          %v555 = vunpack.c.l.b16 %v540
          %v556 = vunpack.c.l.b16 %v541
          %v557 = vunpack.c.l.b16 %v542
          %v558 = vpack.c.b16 %v555, %v554
          %v559 = vpack.c.b16 %v557, %v556
          %v563 = vsel %vm509, %v538, 0
          %565 = vmatprep.subr.bf16.mxu0 0
          %566 = vmatpush1.bf16.msra.mxu0 %v558
          %567 = vmatprep.subr.bf16.mxu0 0
          %568 = vmatpush1.bf16.msra.mxu0 %v559
          %569 = vmatprep.subr.bf16.mxu0 0
          %570 = vmatpush1.bf16.msra.mxu0 0
          %571 = vmatprep.subr.bf16.mxu0 0
          %572 = vmatpush1.bf16.msra.mxu0 0
          %573 = vmatprep.subr.bf16.mxu0 0
          %574 = vmatpush1.bf16.msra.mxu0 0
          %575 = vmatprep.subr.bf16.mxu0 0
          %576 = vmatpush1.bf16.msra.mxu0 0
          %577 = vmatprep.subr.bf16.mxu0 0
          %578 = vmatpush1.bf16.msra.mxu0 0
          %579 = vmatprep.subr.bf16.mxu0 0
          %580 = vmatpush1.bf16.msra.mxu0 0
          %581 = vmatprep.subr.bf16.mxu0 0
          %582 = vmatpush1.bf16.msra.mxu0 0
          %583 = vmatprep.subr.bf16.mxu0 0
          %584 = vmatpush1.bf16.msra.mxu0 0
          %585 = vmatprep.subr.bf16.mxu0 0
          %586 = vmatpush1.bf16.msra.mxu0 0
          %587 = vmatprep.subr.bf16.mxu0 0
          %588 = vmatpush1.bf16.msra.mxu0 0
          %589 = vmatprep.subr.bf16.mxu0 0
          %590 = vmatpush1.bf16.msra.mxu0 0
          %591 = vmatprep.subr.bf16.mxu0 0
          %592 = vmatpush1.bf16.msra.mxu0 0
          %593 = vmatprep.subr.bf16.mxu0 0
          %594 = vmatpush1.bf16.msra.mxu0 0
          %595 = vmatprep.subr.bf16.mxu0 0
          %596 = vmatpush1.bf16.msra.mxu0 0
          %597 = vmatprep.mubr.bf16.mxu0 0
          %598 = vmatmul.mubr.bf16.gmra.mrb[0].mxu0 %v563
          %v599 = vpop.f32.mrb[0].mxu0
          %v600 = vadd.f32 %v548, %v599
          %v601 = vpop.f32.mrb[0].mxu0
          %v602 = vpop.f32.mrb[0].mxu0
          %v603 = vpop.f32.mrb[0].mxu0
          %604 = vdwg.mxu0
          %v605 = vmul.f32 %v600, 0.35355338
          %v606 = vpack.c.bf16 %v605, %v605
          %vm607 = vcmask 60416
          %608 = vst.msk [vmem:[#allocation2] sm:$0xf] %vm607, %v606
          %v609 = vpack.c.bf16 %v600, %v600
          %v611 = vunpack.c.l.b16 %v609
          %v612 = vpack.c.b16 %v611, %v611
          %613 = vrot.lane.b32.xlu0 %v612, 96
          %v614 = vpop.permute.xlu0 %613
          %616 = vst.msk [vmem:[#allocation3] sm:$0xf] %vm607, %v614
          %617 = vrot.lane.b32.xlu0 %v612, 64
          %v618 = vpop.permute.xlu0 %617
          %620 = vst.msk [vmem:[#allocation4] sm:$0xf] %vm607, %v618
          %v622 = vunpack.c.l.b16 %v606
          %v623 = vpack.c.b16 %v622, %v622
          %624 = vrot.lane.b32.xlu0 %v623, 120
          %v625 = vpop.permute.xlu0 %624
          %s627 = scalar_lea.vmem [#allocation2], 4
          %628 = vst.msk [vmem:[%s627] sm:$0xf] %vm607, %v625
          %629 = vrot.lane.b32.xlu0 %v612, 88
          %v630 = vpop.permute.xlu0 %629
          %s632 = scalar_lea.vmem [#allocation3], 4
          %633 = vst.msk [vmem:[%s632] sm:$0xf] %vm607, %v630
          %634 = vrot.lane.b32.xlu0 %v612, 56
          %v635 = vpop.permute.xlu0 %634
          %s637 = scalar_lea.vmem [#allocation4], 4
          %638 = vst.msk [vmem:[%s637] sm:$0xf] %vm607, %v635
          %639 = vrot.lane.b32.xlu0 %v623, 112
          %v640 = vpop.permute.xlu0 %639
          %s642 = scalar_lea.vmem [#allocation2], 8
          %643 = vst.msk [vmem:[%s642] sm:$0xf] %vm607, %v640
          %644 = vrot.lane.b32.xlu0 %v612, 80
          %v645 = vpop.permute.xlu0 %644
          %s647 = scalar_lea.vmem [#allocation3], 8
          %648 = vst.msk [vmem:[%s647] sm:$0xf] %vm607, %v645
          %649 = vrot.lane.b32.xlu0 %v612, 48
          %v650 = vpop.permute.xlu0 %649
          %s652 = scalar_lea.vmem [#allocation4], 8
          %653 = vst.msk [vmem:[%s652] sm:$0xf] %vm607, %v650
          %654 = vrot.lane.b32.xlu0 %v623, 104
          %v655 = vpop.permute.xlu0 %654
          %s657 = scalar_lea.vmem [#allocation2], 12
          %658 = vst.msk [vmem:[%s657] sm:$0xf] %vm607, %v655
          %659 = vrot.lane.b32.xlu0 %v612, 72
          %v660 = vpop.permute.xlu0 %659
          %s662 = scalar_lea.vmem [#allocation3], 12
          %663 = vst.msk [vmem:[%s662] sm:$0xf] %vm607, %v660
          %664 = vrot.lane.b32.xlu0 %v612, 40
          %v665 = vpop.permute.xlu0 %664
          %s667 = scalar_lea.vmem [#allocation4], 12
          %668 = vst.msk [vmem:[%s667] sm:$0xf] %vm607, %v665
        $region92: #{tpu_custom_call.1} parent=71 // pred_fallthru
          _
        %s669 = smul.u32 %s35, 8
        %s670 = sshra.s32 %s669, 3
        %s671 = sand.u32 %s669, 7
        %s672 = smul.addr %s670, 4
        %s673 = scalar_lea.vmem [#allocation2], %s672
        %v674 = vld [vmem:[%s673] sm:$0xf]
        %v675 = vld [vmem:[%s673 + $0x4] sm:$0xf]
        %v676 = vld [vmem:[%s673 + $0x8] sm:$0xf]
        %v677 = vld [vmem:[%s673 + $0xc] sm:$0xf]
        %v678 = vld [vmem:[#allocation3] sm:$0xf]
        %v679 = vld [vmem:[#allocation3 + $0x4] sm:$0xf]
        %v680 = vld [vmem:[#allocation3 + $0x8] sm:$0xf]
        %v681 = vld [vmem:[#allocation3 + $0xc] sm:$0xf]
        %v682 = vld [vmem:[#allocation4] sm:$0xf]
        %v683 = vld [vmem:[#allocation4 + $0x4] sm:$0xf]
        %v684 = vld [vmem:[#allocation4 + $0x8] sm:$0xf]
        %v685 = vld [vmem:[#allocation4 + $0xc] sm:$0xf]
        %vm686 = vcmask 64512
        %v688 = vsel %vm686, %v674, 0
        %v691 = vsel %vm686, %v678, 0
        %693 = vmatprep.subr.bf16.mxu0 0
        %694 = vmatpush1.bf16.xpose.msra.mxu0 %v691
        %695 = vmatprep.subr.bf16.mxu0 0
        %696 = vmatpush1.bf16.xpose.msra.mxu0 0
        %697 = vmatprep.subr.bf16.mxu0 0
        %698 = vmatpush1.bf16.xpose.msra.mxu0 0
        %699 = vmatprep.subr.bf16.mxu0 0
        %700 = vmatpush1.bf16.xpose.msra.mxu0 0
        %701 = vmatprep.subr.bf16.mxu0 0
        %702 = vmatpush1.bf16.xpose.msra.mxu0 0
        %703 = vmatprep.subr.bf16.mxu0 0
        %704 = vmatpush1.bf16.xpose.msra.mxu0 0
        %705 = vmatprep.subr.bf16.mxu0 0
        %706 = vmatpush1.bf16.xpose.msra.mxu0 0
        %707 = vmatprep.subr.bf16.mxu0 0
        %708 = vmatpush1.bf16.xpose.msra.mxu0 0
        %709 = vmatprep.subr.bf16.mxu0 0
        %710 = vmatpush1.bf16.xpose.msra.mxu0 0
        %711 = vmatprep.subr.bf16.mxu0 0
        %712 = vmatpush1.bf16.xpose.msra.mxu0 0
        %713 = vmatprep.subr.bf16.mxu0 0
        %714 = vmatpush1.bf16.xpose.msra.mxu0 0
        %715 = vmatprep.subr.bf16.mxu0 0
        %716 = vmatpush1.bf16.xpose.msra.mxu0 0
        %717 = vmatprep.subr.bf16.mxu0 0
        %718 = vmatpush1.bf16.xpose.msra.mxu0 0
        %719 = vmatprep.subr.bf16.mxu0 0
        %720 = vmatpush1.bf16.xpose.msra.mxu0 0
        %721 = vmatprep.subr.bf16.mxu0 0
        %722 = vmatpush1.bf16.xpose.msra.mxu0 0
        %723 = vmatprep.subr.bf16.mxu0 0
        %724 = vmatpush1.bf16.xpose.msra.mxu0 0
        %725 = vmatprep.mubr.bf16.mxu0 0
        %726 = vmatmul.mubr.bf16.gmra.mrb[0].mxu0 %v688
        %v727 = vpop.f32.mrb[0].mxu0
        %v728 = vadd.f32 0.0, %v727
        %v729 = vpop.f32.mrb[0].mxu0
        %v730 = vpop.f32.mrb[0].mxu0
        %v731 = vpop.f32.mrb[0].mxu0
        %732 = vdwg.mxu0
        %v734 = vsel %vm686, %v675, 0
        %v737 = vsel %vm686, %v679, 0
        %739 = vmatprep.subr.bf16.mxu0 0
        %740 = vmatpush1.bf16.xpose.msra.mxu0 %v737
        %741 = vmatprep.subr.bf16.mxu0 0
        %742 = vmatpush1.bf16.xpose.msra.mxu0 0
        %743 = vmatprep.subr.bf16.mxu0 0
        %744 = vmatpush1.bf16.xpose.msra.mxu0 0
        %745 = vmatprep.subr.bf16.mxu0 0
        %746 = vmatpush1.bf16.xpose.msra.mxu0 0
        %747 = vmatprep.subr.bf16.mxu0 0
        %748 = vmatpush1.bf16.xpose.msra.mxu0 0
        %749 = vmatprep.subr.bf16.mxu0 0
        %750 = vmatpush1.bf16.xpose.msra.mxu0 0
        %751 = vmatprep.subr.bf16.mxu0 0
        %752 = vmatpush1.bf16.xpose.msra.mxu0 0
        %753 = vmatprep.subr.bf16.mxu0 0
        %754 = vmatpush1.bf16.xpose.msra.mxu0 0
        %755 = vmatprep.subr.bf16.mxu0 0
        %756 = vmatpush1.bf16.xpose.msra.mxu0 0
        %757 = vmatprep.subr.bf16.mxu0 0
        %758 = vmatpush1.bf16.xpose.msra.mxu0 0
        %759 = vmatprep.subr.bf16.mxu0 0
        %760 = vmatpush1.bf16.xpose.msra.mxu0 0
        %761 = vmatprep.subr.bf16.mxu0 0
        %762 = vmatpush1.bf16.xpose.msra.mxu0 0
        %763 = vmatprep.subr.bf16.mxu0 0
        %764 = vmatpush1.bf16.xpose.msra.mxu0 0
        %765 = vmatprep.subr.bf16.mxu0 0
        %766 = vmatpush1.bf16.xpose.msra.mxu0 0
        %767 = vmatprep.subr.bf16.mxu0 0
        %768 = vmatpush1.bf16.xpose.msra.mxu0 0
        %769 = vmatprep.subr.bf16.mxu0 0
        %770 = vmatpush1.bf16.xpose.msra.mxu0 0
        %771 = vmatprep.mubr.bf16.mxu0 0
        %772 = vmatmul.mubr.bf16.gmra.mrb[0].mxu0 %v734
        %v773 = vpop.f32.mrb[0].mxu0
        %v774 = vadd.f32 0.0, %v773
        %v775 = vpop.f32.mrb[0].mxu0
        %v776 = vpop.f32.mrb[0].mxu0
        %v777 = vpop.f32.mrb[0].mxu0
        %778 = vdwg.mxu0
        %v780 = vsel %vm686, %v676, 0
        %v783 = vsel %vm686, %v680, 0
        %785 = vmatprep.subr.bf16.mxu0 0
        %786 = vmatpush1.bf16.xpose.msra.mxu0 %v783
        %787 = vmatprep.subr.bf16.mxu0 0
        %788 = vmatpush1.bf16.xpose.msra.mxu0 0
        %789 = vmatprep.subr.bf16.mxu0 0
        %790 = vmatpush1.bf16.xpose.msra.mxu0 0
        %791 = vmatprep.subr.bf16.mxu0 0
        %792 = vmatpush1.bf16.xpose.msra.mxu0 0
        %793 = vmatprep.subr.bf16.mxu0 0
        %794 = vmatpush1.bf16.xpose.msra.mxu0 0
        %795 = vmatprep.subr.bf16.mxu0 0
        %796 = vmatpush1.bf16.xpose.msra.mxu0 0
        %797 = vmatprep.subr.bf16.mxu0 0
        %798 = vmatpush1.bf16.xpose.msra.mxu0 0
        %799 = vmatprep.subr.bf16.mxu0 0
        %800 = vmatpush1.bf16.xpose.msra.mxu0 0
        %801 = vmatprep.subr.bf16.mxu0 0
        %802 = vmatpush1.bf16.xpose.msra.mxu0 0
        %803 = vmatprep.subr.bf16.mxu0 0
        %804 = vmatpush1.bf16.xpose.msra.mxu0 0
        %805 = vmatprep.subr.bf16.mxu0 0
        %806 = vmatpush1.bf16.xpose.msra.mxu0 0
        %807 = vmatprep.subr.bf16.mxu0 0
        %808 = vmatpush1.bf16.xpose.msra.mxu0 0
        %809 = vmatprep.subr.bf16.mxu0 0
        %810 = vmatpush1.bf16.xpose.msra.mxu0 0
        %811 = vmatprep.subr.bf16.mxu0 0
        %812 = vmatpush1.bf16.xpose.msra.mxu0 0
        %813 = vmatprep.subr.bf16.mxu0 0
        %814 = vmatpush1.bf16.xpose.msra.mxu0 0
        %815 = vmatprep.subr.bf16.mxu0 0
        %816 = vmatpush1.bf16.xpose.msra.mxu0 0
        %817 = vmatprep.mubr.bf16.mxu0 0
        %818 = vmatmul.mubr.bf16.gmra.mrb[0].mxu0 %v780
        %v819 = vpop.f32.mrb[0].mxu0
        %v820 = vadd.f32 0.0, %v819
        %v821 = vpop.f32.mrb[0].mxu0
        %v822 = vpop.f32.mrb[0].mxu0
        %v823 = vpop.f32.mrb[0].mxu0
        %824 = vdwg.mxu0
        %v826 = vsel %vm686, %v677, 0
        %v829 = vsel %vm686, %v681, 0
        %831 = vmatprep.subr.bf16.mxu0 0
        %832 = vmatpush1.bf16.xpose.msra.mxu0 %v829
        %833 = vmatprep.subr.bf16.mxu0 0
        %834 = vmatpush1.bf16.xpose.msra.mxu0 0
        %835 = vmatprep.subr.bf16.mxu0 0
        %836 = vmatpush1.bf16.xpose.msra.mxu0 0
        %837 = vmatprep.subr.bf16.mxu0 0
        %838 = vmatpush1.bf16.xpose.msra.mxu0 0
        %839 = vmatprep.subr.bf16.mxu0 0
        %840 = vmatpush1.bf16.xpose.msra.mxu0 0
        %841 = vmatprep.subr.bf16.mxu0 0
        %842 = vmatpush1.bf16.xpose.msra.mxu0 0
        %843 = vmatprep.subr.bf16.mxu0 0
        %844 = vmatpush1.bf16.xpose.msra.mxu0 0
        %845 = vmatprep.subr.bf16.mxu0 0
        %846 = vmatpush1.bf16.xpose.msra.mxu0 0
        %847 = vmatprep.subr.bf16.mxu0 0
        %848 = vmatpush1.bf16.xpose.msra.mxu0 0
        %849 = vmatprep.subr.bf16.mxu0 0
        %850 = vmatpush1.bf16.xpose.msra.mxu0 0
        %851 = vmatprep.subr.bf16.mxu0 0
        %852 = vmatpush1.bf16.xpose.msra.mxu0 0
        %853 = vmatprep.subr.bf16.mxu0 0
        %854 = vmatpush1.bf16.xpose.msra.mxu0 0
        %855 = vmatprep.subr.bf16.mxu0 0
        %856 = vmatpush1.bf16.xpose.msra.mxu0 0
        %857 = vmatprep.subr.bf16.mxu0 0
        %858 = vmatpush1.bf16.xpose.msra.mxu0 0
        %859 = vmatprep.subr.bf16.mxu0 0
        %860 = vmatpush1.bf16.xpose.msra.mxu0 0
        %861 = vmatprep.subr.bf16.mxu0 0
        %862 = vmatpush1.bf16.xpose.msra.mxu0 0
        %863 = vmatprep.mubr.bf16.mxu0 0
        %864 = vmatmul.mubr.bf16.gmra.mrb[0].mxu0 %v826
        %v865 = vpop.f32.mrb[0].mxu0
        %v866 = vadd.f32 0.0, %v865
        %v867 = vpop.f32.mrb[0].mxu0
        %v868 = vpop.f32.mrb[0].mxu0
        %v869 = vpop.f32.mrb[0].mxu0
        %870 = vdwg.mxu0
        %v871 = vsel %vm686, %v728, -inf
        %872 = vmax.xlane.f32.xlu0 %v871
        %v873 = vpop.xlane.xlu0 %872
        %v874 = vsel %vm686, %v774, -inf
        %875 = vmax.xlane.f32.xlu0 %v874
        %v876 = vpop.xlane.xlu0 %875
        %v877 = vsel %vm686, %v820, -inf
        %878 = vmax.xlane.f32.xlu0 %v877
        %v879 = vpop.xlane.xlu0 %878
        %v880 = vsel %vm686, %v866, -inf
        %881 = vmax.xlane.f32.xlu0 %v880
        %v882 = vpop.xlane.xlu0 %881
        %v883 = vsub.f32 %v728, %v873
        %v884 = vsub.f32 %v774, %v876
        %v885 = vsub.f32 %v820, %v879
        %v886 = vsub.f32 %v866, %v882
        %v887 = vmul.f32 %v883, 1.442695
        %v888 = vpow.pop %v887
        %v889 = vmul.f32 %v884, 1.442695
        %v890 = vpow.pop %v889
        %v891 = vmul.f32 %v885, 1.442695
        %v892 = vpow.pop %v891
        %v893 = vmul.f32 %v886, 1.442695
        %v894 = vpow.pop %v893
        %v895 = vsel %vm686, %v888, 0.0
        %896 = vadd.xlane.f32.xlu0 %v895
        %v897 = vpop.xlane.xlu0 %896
        %v898 = vsel %vm686, %v890, 0.0
        %899 = vadd.xlane.f32.xlu0 %v898
        %v900 = vpop.xlane.xlu0 %899
        %v901 = vsel %vm686, %v892, 0.0
        %902 = vadd.xlane.f32.xlu0 %v901
        %v903 = vpop.xlane.xlu0 %902
        %v904 = vsel %vm686, %v894, 0.0
        %905 = vadd.xlane.f32.xlu0 %v904
        %v906 = vpop.xlane.xlu0 %905
        %v907 = vrcp.pop %v897
        %v908 = vrcp.pop %v900
        %v909 = vrcp.pop %v903
        %v910 = vrcp.pop %v906
        %v911 = vmul.f32 %v888, %v907
        %v912 = vmul.f32 %v890, %v908
        %v913 = vmul.f32 %v892, %v909
        %v914 = vmul.f32 %v894, %v910
        %v915 = vpack.c.bf16 %v911, %v911
        %v916 = vpack.c.bf16 %v912, %v912
        %v917 = vpack.c.bf16 %v913, %v913
        %v918 = vpack.c.bf16 %v914, %v914
        %v920 = vsel %vm686, %v915, 0
        %vm922 = vcmask 1043456
        %v924 = vsel %vm922, %v682, 0
        %926 = vmatprep.subr.bf16.mxu0 0
        %927 = vmatpush1.bf16.msra.mxu0 %v924
        %928 = vmatprep.subr.bf16.mxu0 0
        %929 = vmatpush1.bf16.msra.mxu0 0
        %930 = vmatprep.subr.bf16.mxu0 0
        %931 = vmatpush1.bf16.msra.mxu0 0
        %932 = vmatprep.subr.bf16.mxu0 0
        %933 = vmatpush1.bf16.msra.mxu0 0
        %934 = vmatprep.subr.bf16.mxu0 0
        %935 = vmatpush1.bf16.msra.mxu0 0
        %936 = vmatprep.subr.bf16.mxu0 0
        %937 = vmatpush1.bf16.msra.mxu0 0
        %938 = vmatprep.subr.bf16.mxu0 0
        %939 = vmatpush1.bf16.msra.mxu0 0
        %940 = vmatprep.subr.bf16.mxu0 0
        %941 = vmatpush1.bf16.msra.mxu0 0
        %942 = vmatprep.subr.bf16.mxu0 0
        %943 = vmatpush1.bf16.msra.mxu0 0
        %944 = vmatprep.subr.bf16.mxu0 0
        %945 = vmatpush1.bf16.msra.mxu0 0
        %946 = vmatprep.subr.bf16.mxu0 0
        %947 = vmatpush1.bf16.msra.mxu0 0
        %948 = vmatprep.subr.bf16.mxu0 0
        %949 = vmatpush1.bf16.msra.mxu0 0
        %950 = vmatprep.subr.bf16.mxu0 0
        %951 = vmatpush1.bf16.msra.mxu0 0
        %952 = vmatprep.subr.bf16.mxu0 0
        %953 = vmatpush1.bf16.msra.mxu0 0
        %954 = vmatprep.subr.bf16.mxu0 0
        %955 = vmatpush1.bf16.msra.mxu0 0
        %956 = vmatprep.subr.bf16.mxu0 0
        %957 = vmatpush1.bf16.msra.mxu0 0
        %958 = vmatprep.mubr.bf16.mxu0 0
        %959 = vmatmul.mubr.bf16.gmra.mrb[0].mxu0 %v920
        %v960 = vpop.f32.mrb[0].mxu0
        %v961 = vadd.f32 0.0, %v960
        %v962 = vpop.f32.mrb[0].mxu0
        %v963 = vpop.f32.mrb[0].mxu0
        %v964 = vpop.f32.mrb[0].mxu0
        %965 = vdwg.mxu0
        %v967 = vsel %vm686, %v916, 0
        %v970 = vsel %vm922, %v683, 0
        %972 = vmatprep.subr.bf16.mxu0 0
        %973 = vmatpush1.bf16.msra.mxu0 %v970
        %974 = vmatprep.subr.bf16.mxu0 0
        %975 = vmatpush1.bf16.msra.mxu0 0
        %976 = vmatprep.subr.bf16.mxu0 0
        %977 = vmatpush1.bf16.msra.mxu0 0
        %978 = vmatprep.subr.bf16.mxu0 0
        %979 = vmatpush1.bf16.msra.mxu0 0
        %980 = vmatprep.subr.bf16.mxu0 0
        %981 = vmatpush1.bf16.msra.mxu0 0
        %982 = vmatprep.subr.bf16.mxu0 0
        %983 = vmatpush1.bf16.msra.mxu0 0
        %984 = vmatprep.subr.bf16.mxu0 0
        %985 = vmatpush1.bf16.msra.mxu0 0
        %986 = vmatprep.subr.bf16.mxu0 0
        %987 = vmatpush1.bf16.msra.mxu0 0
        %988 = vmatprep.subr.bf16.mxu0 0
        %989 = vmatpush1.bf16.msra.mxu0 0
        %990 = vmatprep.subr.bf16.mxu0 0
        %991 = vmatpush1.bf16.msra.mxu0 0
        %992 = vmatprep.subr.bf16.mxu0 0
        %993 = vmatpush1.bf16.msra.mxu0 0
        %994 = vmatprep.subr.bf16.mxu0 0
        %995 = vmatpush1.bf16.msra.mxu0 0
        %996 = vmatprep.subr.bf16.mxu0 0
        %997 = vmatpush1.bf16.msra.mxu0 0
        %998 = vmatprep.subr.bf16.mxu0 0
        %999 = vmatpush1.bf16.msra.mxu0 0
        %1000 = vmatprep.subr.bf16.mxu0 0
        %1001 = vmatpush1.bf16.msra.mxu0 0
        %1002 = vmatprep.subr.bf16.mxu0 0
        %1003 = vmatpush1.bf16.msra.mxu0 0
        %1004 = vmatprep.mubr.bf16.mxu0 0
        %1005 = vmatmul.mubr.bf16.gmra.mrb[0].mxu0 %v967
        %v1006 = vpop.f32.mrb[0].mxu0
        %v1007 = vadd.f32 0.0, %v1006
        %v1008 = vpop.f32.mrb[0].mxu0
        %v1009 = vpop.f32.mrb[0].mxu0
        %v1010 = vpop.f32.mrb[0].mxu0
        %1011 = vdwg.mxu0
        %v1013 = vsel %vm686, %v917, 0
        %v1016 = vsel %vm922, %v684, 0
        %1018 = vmatprep.subr.bf16.mxu0 0
        %1019 = vmatpush1.bf16.msra.mxu0 %v1016
        %1020 = vmatprep.subr.bf16.mxu0 0
        %1021 = vmatpush1.bf16.msra.mxu0 0
        %1022 = vmatprep.subr.bf16.mxu0 0
        %1023 = vmatpush1.bf16.msra.mxu0 0
        %1024 = vmatprep.subr.bf16.mxu0 0
        %1025 = vmatpush1.bf16.msra.mxu0 0
        %1026 = vmatprep.subr.bf16.mxu0 0
        %1027 = vmatpush1.bf16.msra.mxu0 0
        %1028 = vmatprep.subr.bf16.mxu0 0
        %1029 = vmatpush1.bf16.msra.mxu0 0
        %1030 = vmatprep.subr.bf16.mxu0 0
        %1031 = vmatpush1.bf16.msra.mxu0 0
        %1032 = vmatprep.subr.bf16.mxu0 0
        %1033 = vmatpush1.bf16.msra.mxu0 0
        %1034 = vmatprep.subr.bf16.mxu0 0
        %1035 = vmatpush1.bf16.msra.mxu0 0
        %1036 = vmatprep.subr.bf16.mxu0 0
        %1037 = vmatpush1.bf16.msra.mxu0 0
        %1038 = vmatprep.subr.bf16.mxu0 0
        %1039 = vmatpush1.bf16.msra.mxu0 0
        %1040 = vmatprep.subr.bf16.mxu0 0
        %1041 = vmatpush1.bf16.msra.mxu0 0
        %1042 = vmatprep.subr.bf16.mxu0 0
        %1043 = vmatpush1.bf16.msra.mxu0 0
        %1044 = vmatprep.subr.bf16.mxu0 0
        %1045 = vmatpush1.bf16.msra.mxu0 0
        %1046 = vmatprep.subr.bf16.mxu0 0
        %1047 = vmatpush1.bf16.msra.mxu0 0
        %1048 = vmatprep.subr.bf16.mxu0 0
        %1049 = vmatpush1.bf16.msra.mxu0 0
        %1050 = vmatprep.mubr.bf16.mxu0 0
        %1051 = vmatmul.mubr.bf16.gmra.mrb[0].mxu0 %v1013
        %v1052 = vpop.f32.mrb[0].mxu0
        %v1053 = vadd.f32 0.0, %v1052
        %v1054 = vpop.f32.mrb[0].mxu0
        %v1055 = vpop.f32.mrb[0].mxu0
        %v1056 = vpop.f32.mrb[0].mxu0
        %1057 = vdwg.mxu0
        %v1059 = vsel %vm686, %v918, 0
        %v1062 = vsel %vm922, %v685, 0
        %1064 = vmatprep.subr.bf16.mxu0 0
        %1065 = vmatpush1.bf16.msra.mxu0 %v1062
        %1066 = vmatprep.subr.bf16.mxu0 0
        %1067 = vmatpush1.bf16.msra.mxu0 0
        %1068 = vmatprep.subr.bf16.mxu0 0
        %1069 = vmatpush1.bf16.msra.mxu0 0
        %1070 = vmatprep.subr.bf16.mxu0 0
        %1071 = vmatpush1.bf16.msra.mxu0 0
        %1072 = vmatprep.subr.bf16.mxu0 0
        %1073 = vmatpush1.bf16.msra.mxu0 0
        %1074 = vmatprep.subr.bf16.mxu0 0
        %1075 = vmatpush1.bf16.msra.mxu0 0
        %1076 = vmatprep.subr.bf16.mxu0 0
        %1077 = vmatpush1.bf16.msra.mxu0 0
        %1078 = vmatprep.subr.bf16.mxu0 0
        %1079 = vmatpush1.bf16.msra.mxu0 0
        %1080 = vmatprep.subr.bf16.mxu0 0
        %1081 = vmatpush1.bf16.msra.mxu0 0
        %1082 = vmatprep.subr.bf16.mxu0 0
        %1083 = vmatpush1.bf16.msra.mxu0 0
        %1084 = vmatprep.subr.bf16.mxu0 0
        %1085 = vmatpush1.bf16.msra.mxu0 0
        %1086 = vmatprep.subr.bf16.mxu0 0
        %1087 = vmatpush1.bf16.msra.mxu0 0
        %1088 = vmatprep.subr.bf16.mxu0 0
        %1089 = vmatpush1.bf16.msra.mxu0 0
        %1090 = vmatprep.subr.bf16.mxu0 0
        %1091 = vmatpush1.bf16.msra.mxu0 0
        %1092 = vmatprep.subr.bf16.mxu0 0
        %1093 = vmatpush1.bf16.msra.mxu0 0
        %1094 = vmatprep.subr.bf16.mxu0 0
        %1095 = vmatpush1.bf16.msra.mxu0 0
        %1096 = vmatprep.mubr.bf16.mxu0 0
        %1097 = vmatmul.mubr.bf16.gmra.mrb[0].mxu0 %v1059
        %v1098 = vpop.f32.mrb[0].mxu0
        %v1099 = vadd.f32 0.0, %v1098
        %v1100 = vpop.f32.mrb[0].mxu0
        %v1101 = vpop.f32.mrb[0].mxu0
        %v1102 = vpop.f32.mrb[0].mxu0
        %1103 = vdwg.mxu0
        %1105 = vrot.lane.b32.xlu0 %v1007, 8
        %v1106 = vpop.permute.xlu0 %1105
        %1109 = vrot.lane.b32.xlu0 %v1053, 16
        %v1110 = vpop.permute.xlu0 %1109
        %1113 = vrot.lane.b32.xlu0 %v1099, 24
        %v1114 = vpop.permute.xlu0 %1113
        %v1116 = vsel %vm686, %v961, %v1106
        %vm1117 = vcmask 130048
        %v1118 = vsel %vm1117, %v1116, %v1110
        %vm1119 = vcmask 195584
        %v1120 = vsel %vm1119, %v1118, %v1114
        %v1121 = vpack.c.bf16 %v1120, %v1120
        %v1122 = vld [vmem:[%s3] sm:$0xf]
        %v1123 = vld [vmem:[%s3 + $0x4] sm:$0xf]
        %v1124 = vld [vmem:[%s3 + $0x8] sm:$0xf]
        %v1125 = vld [vmem:[%s3 + $0xc] sm:$0xf]
        %v1126 = vld [vmem:[%s4] sm:$0x1]
        %v1128 = vlaneseq
        %v1129 = vshrl.u32 %v1128, 7
        %v1130 = vsub.s32 0, %v1129
        %v1131 = vrot.slane %v1126, %v1130
        %v1137 = vunpack.c.l.b16 %v1122
        %v1138 = vunpack.c.l.b16 %v1123
        %v1139 = vunpack.c.l.b16 %v1124
        %v1140 = vunpack.c.l.b16 %v1125
        %v1141 = vpack.c.b16 %v1138, %v1137
        %v1142 = vpack.c.b16 %v1140, %v1139
        %vm1145 = vcmask 261120
        %v1147 = vsel %vm1145, %v1121, 0
        %1149 = vmatprep.subr.bf16.mxu0 0
        %1150 = vmatpush1.bf16.msra.mxu0 %v1141
        %1151 = vmatprep.subr.bf16.mxu0 0
        %1152 = vmatpush1.bf16.msra.mxu0 %v1142
        %1153 = vmatprep.subr.bf16.mxu0 0
        %1154 = vmatpush1.bf16.msra.mxu0 0
        %1155 = vmatprep.subr.bf16.mxu0 0
        %1156 = vmatpush1.bf16.msra.mxu0 0
        %1157 = vmatprep.subr.bf16.mxu0 0
        %1158 = vmatpush1.bf16.msra.mxu0 0
        %1159 = vmatprep.subr.bf16.mxu0 0
        %1160 = vmatpush1.bf16.msra.mxu0 0
        %1161 = vmatprep.subr.bf16.mxu0 0
        %1162 = vmatpush1.bf16.msra.mxu0 0
        %1163 = vmatprep.subr.bf16.mxu0 0
        %1164 = vmatpush1.bf16.msra.mxu0 0
        %1165 = vmatprep.subr.bf16.mxu0 0
        %1166 = vmatpush1.bf16.msra.mxu0 0
        %1167 = vmatprep.subr.bf16.mxu0 0
        %1168 = vmatpush1.bf16.msra.mxu0 0
        %1169 = vmatprep.subr.bf16.mxu0 0
        %1170 = vmatpush1.bf16.msra.mxu0 0
        %1171 = vmatprep.subr.bf16.mxu0 0
        %1172 = vmatpush1.bf16.msra.mxu0 0
        %1173 = vmatprep.subr.bf16.mxu0 0
        %1174 = vmatpush1.bf16.msra.mxu0 0
        %1175 = vmatprep.subr.bf16.mxu0 0
        %1176 = vmatpush1.bf16.msra.mxu0 0
        %1177 = vmatprep.subr.bf16.mxu0 0
        %1178 = vmatpush1.bf16.msra.mxu0 0
        %1179 = vmatprep.subr.bf16.mxu0 0
        %1180 = vmatpush1.bf16.msra.mxu0 0
        %1181 = vmatprep.mubr.bf16.mxu0 0
        %1182 = vmatmul.mubr.bf16.gmra.mrb[0].mxu0 %v1147
        %v1183 = vpop.f32.mrb[0].mxu0
        %v1184 = vadd.f32 %v1131, %v1183
        %v1185 = vpop.f32.mrb[0].mxu0
        %v1186 = vpop.f32.mrb[0].mxu0
        %v1187 = vpop.f32.mrb[0].mxu0
        %1188 = vdwg.mxu0
        %s1189 = scalar_lea.vmem %s500, %s669
        %v1190 = vld [vmem:[%s1189] sm:$0xff]
        %v1191 = vadd.f32 %v1190, %v1184
        %v1192 = vld [vmem:[#allocation10] sm:$0x1]
        %v1193 = vld [vmem:[#allocation11] sm:$0x1]
        %v1194 = vsel %vm1145, %v1191, 0.0
        %1195 = vadd.xlane.f32.xlu0 %v1194
        %v1196 = vpop.xlane.xlu0 %1195
        %v1197 = vrcp.pop 32.0
        %v1198 = vmul.f32 %v1196, %v1197
        %v1199 = vsub.f32 %v1191, %v1198
        %v1200 = vmul.f32 %v1199, %v1199
        %v1201 = vsel %vm1145, %v1200, 0.0
        %1202 = vadd.xlane.f32.xlu0 %v1201
        %v1203 = vpop.xlane.xlu0 %1202
        %v1204 = vmul.f32 %v1203, %v1197
        %v1205 = vadd.f32 %v1204, 1e-05
        %v1206 = vrsqrt.pop %v1205
        %v1207 = vmul.f32 %v1199, %v1206
        %v1209 = vlaneseq
        %v1210 = vshrl.u32 %v1209, 7
        %v1211 = vsub.s32 0, %v1210
        %v1212 = vrot.slane %v1192, %v1211
        %v1214 = vmul.f32 %v1207, %v1212
        %v1216 = vlaneseq
        %v1217 = vshrl.u32 %v1216, 7
        %v1218 = vsub.s32 0, %v1217
        %v1219 = vrot.slane %v1193, %v1218
        %v1221 = vadd.f32 %v1214, %v1219
        %v1222 = vpack.c.bf16 %v1221, %v1221
        %v1223 = vld [vmem:[%s9] sm:$0xf]
        %v1224 = vld [vmem:[%s9 + $0x4] sm:$0xf]
        %v1225 = vld [vmem:[%s9 + $0x8] sm:$0xf]
        %v1226 = vld [vmem:[%s9 + $0xc] sm:$0xf]
        %v1227 = vld [vmem:[%s10] sm:$0x1]
        %v1229 = vlaneseq
        %v1230 = vshrl.u32 %v1229, 7
        %v1231 = vsub.s32 0, %v1230
        %v1232 = vrot.slane %v1227, %v1231
        %v1238 = vunpack.c.l.b16 %v1223
        %v1239 = vunpack.c.l.b16 %v1224
        %v1240 = vunpack.c.l.b16 %v1225
        %v1241 = vunpack.c.l.b16 %v1226
        %v1242 = vpack.c.b16 %v1239, %v1238
        %v1243 = vpack.c.b16 %v1241, %v1240
        %v1247 = vsel %vm1145, %v1222, 0
        %1249 = vmatprep.subr.bf16.mxu0 0
        %1250 = vmatpush1.bf16.msra.mxu0 %v1242
        %1251 = vmatprep.subr.bf16.mxu0 0
        %1252 = vmatpush1.bf16.msra.mxu0 %v1243
        %1253 = vmatprep.subr.bf16.mxu0 0
        %1254 = vmatpush1.bf16.msra.mxu0 0
        %1255 = vmatprep.subr.bf16.mxu0 0
        %1256 = vmatpush1.bf16.msra.mxu0 0
        %1257 = vmatprep.subr.bf16.mxu0 0
        %1258 = vmatpush1.bf16.msra.mxu0 0
        %1259 = vmatprep.subr.bf16.mxu0 0
        %1260 = vmatpush1.bf16.msra.mxu0 0
        %1261 = vmatprep.subr.bf16.mxu0 0
        %1262 = vmatpush1.bf16.msra.mxu0 0
        %1263 = vmatprep.subr.bf16.mxu0 0
        %1264 = vmatpush1.bf16.msra.mxu0 0
        %1265 = vmatprep.subr.bf16.mxu0 0
        %1266 = vmatpush1.bf16.msra.mxu0 0
        %1267 = vmatprep.subr.bf16.mxu0 0
        %1268 = vmatpush1.bf16.msra.mxu0 0
        %1269 = vmatprep.subr.bf16.mxu0 0
        %1270 = vmatpush1.bf16.msra.mxu0 0
        %1271 = vmatprep.subr.bf16.mxu0 0
        %1272 = vmatpush1.bf16.msra.mxu0 0
        %1273 = vmatprep.subr.bf16.mxu0 0
        %1274 = vmatpush1.bf16.msra.mxu0 0
        %1275 = vmatprep.subr.bf16.mxu0 0
        %1276 = vmatpush1.bf16.msra.mxu0 0
        %1277 = vmatprep.subr.bf16.mxu0 0
        %1278 = vmatpush1.bf16.msra.mxu0 0
        %1279 = vmatprep.subr.bf16.mxu0 0
        %1280 = vmatpush1.bf16.msra.mxu0 0
        %1281 = vmatprep.mubr.bf16.mxu0 0
        %1282 = vmatmul.mubr.bf16.gmra.mrb[0].mxu0 %v1247
        %v1283 = vpop.f32.mrb[0].mxu0
        %v1284 = vadd.f32 %v1232, %v1283
        %v1285 = vpop.f32.mrb[0].mxu0
        %v1286 = vpop.f32.mrb[0].mxu0
        %v1287 = vpop.f32.mrb[0].mxu0
        %1288 = vdwg.mxu0
        %v1289 = vmax.f32 %v1284, 0.0
        %v1290 = vpack.c.bf16 %v1289, %v1289
        %v1291 = vld [vmem:[%s11] sm:$0xf]
        %v1292 = vld [vmem:[%s11 + $0x4] sm:$0xf]
        %v1293 = vld [vmem:[%s11 + $0x8] sm:$0xf]
        %v1294 = vld [vmem:[%s11 + $0xc] sm:$0xf]
        %v1295 = vld [vmem:[%s11 + $0x10] sm:$0xf]
        %v1296 = vld [vmem:[%s11 + $0x14] sm:$0xf]
        %v1297 = vld [vmem:[%s11 + $0x18] sm:$0xf]
        %v1298 = vld [vmem:[%s11 + $0x1c] sm:$0xf]
        %v1299 = vld [vmem:[%s12] sm:$0x1]
        %v1301 = vlaneseq
        %v1302 = vshrl.u32 %v1301, 7
        %v1303 = vsub.s32 0, %v1302
        %v1304 = vrot.slane %v1299, %v1303
        %v1314 = vunpack.c.l.b16 %v1291
        %v1315 = vunpack.c.l.b16 %v1292
        %v1316 = vunpack.c.l.b16 %v1293
        %v1317 = vunpack.c.l.b16 %v1294
        %v1318 = vunpack.c.l.b16 %v1295
        %v1319 = vunpack.c.l.b16 %v1296
        %v1320 = vunpack.c.l.b16 %v1297
        %v1321 = vunpack.c.l.b16 %v1298
        %v1322 = vpack.c.b16 %v1315, %v1314
        %v1323 = vpack.c.b16 %v1317, %v1316
        %v1324 = vpack.c.b16 %v1319, %v1318
        %v1325 = vpack.c.b16 %v1321, %v1320
        %vm1330 = vcmask 523264
        %v1332 = vsel %vm1330, %v1290, 0
        %1334 = vmatprep.subr.bf16.mxu0 0
        %1335 = vmatpush1.bf16.msra.mxu0 %v1322
        %1336 = vmatprep.subr.bf16.mxu0 0
        %1337 = vmatpush1.bf16.msra.mxu0 %v1323
        %1338 = vmatprep.subr.bf16.mxu0 0
        %1339 = vmatpush1.bf16.msra.mxu0 %v1324
        %1340 = vmatprep.subr.bf16.mxu0 0
        %1341 = vmatpush1.bf16.msra.mxu0 %v1325
        %1342 = vmatprep.subr.bf16.mxu0 0
        %1343 = vmatpush1.bf16.msra.mxu0 0
        %1344 = vmatprep.subr.bf16.mxu0 0
        %1345 = vmatpush1.bf16.msra.mxu0 0
        %1346 = vmatprep.subr.bf16.mxu0 0
        %1347 = vmatpush1.bf16.msra.mxu0 0
        %1348 = vmatprep.subr.bf16.mxu0 0
        %1349 = vmatpush1.bf16.msra.mxu0 0
        %1350 = vmatprep.subr.bf16.mxu0 0
        %1351 = vmatpush1.bf16.msra.mxu0 0
        %1352 = vmatprep.subr.bf16.mxu0 0
        %1353 = vmatpush1.bf16.msra.mxu0 0
        %1354 = vmatprep.subr.bf16.mxu0 0
        %1355 = vmatpush1.bf16.msra.mxu0 0
        %1356 = vmatprep.subr.bf16.mxu0 0
        %1357 = vmatpush1.bf16.msra.mxu0 0
        %1358 = vmatprep.subr.bf16.mxu0 0
        %1359 = vmatpush1.bf16.msra.mxu0 0
        %1360 = vmatprep.subr.bf16.mxu0 0
        %1361 = vmatpush1.bf16.msra.mxu0 0
        %1362 = vmatprep.subr.bf16.mxu0 0
        %1363 = vmatpush1.bf16.msra.mxu0 0
        %1364 = vmatprep.subr.bf16.mxu0 0
        %1365 = vmatpush1.bf16.msra.mxu0 0
        %1366 = vmatprep.mubr.bf16.mxu0 0
        %1367 = vmatmul.mubr.bf16.gmra.mrb[0].mxu0 %v1332
        %v1368 = vpop.f32.mrb[0].mxu0
        %v1369 = vadd.f32 %v1304, %v1368
        %v1370 = vpop.f32.mrb[0].mxu0
        %v1371 = vpop.f32.mrb[0].mxu0
        %v1372 = vpop.f32.mrb[0].mxu0
        %1373 = vdwg.mxu0
        %v1374 = vadd.f32 %v1191, %v1369
        %1375 = vst.msk [vmem:[%s496] sm:$0xff] %vm1145, %v1374
        %s1376 = sand.u32 %s330, 1
        %s1377 = scalar_lea.sflag [#allocation7], %s1376
        %s1378 = sand.u32 %s330, 1
        %s1379 = smul.addr %s1378, 8
        %s1380 = scalar_lea.vmem [#allocation13], %s1379
        // Predicated region
        $region93: #{tpu_custom_call.1} parent=71 // pred_check
          %p1381 = pneg %p340
        $region94: #{tpu_custom_call.1} parent=71 // pred_check_branch
          %1383 = sbr.rel (%p1381) target = $region96
        $region95: #{tpu_custom_call.1} parent=71 // pred_region
          %s1385 = ssub.s32 128, 128
          %1386 = vsyncadd %s1377, %s1385
          %s1387 = sadd.s32 %s35, %s34
          %s1388 = smul.addr %s1387, 128
          %s1389 = scalar_lea.hbm %s13, %s1388
          %s1391 = sshll.u32 %s1380, 4
          %s1392 = int_to_ptr.vmem [resolvable:$true] %s1391
          %1394 = dma.vmem_to_hbm [thread:$0]  %s1392, 128, %s1389, %s1377
        $region96: #{tpu_custom_call.1} parent=71 // pred_fallthru
          _
      $region72: #{tpu_custom_call.1} parent=5 // pred_fallthru
        _
      %p1395 = scmp.le.s32.totalorder 2, %s25
      // Predicated region
      $region97: #{tpu_custom_call.1} parent=5 // pred_check
        %p1396 = pneg %p1395
      $region98: #{tpu_custom_call.1} parent=5 // pred_check_branch
        %1398 = sbr.rel (%p1396) target = $region100
      $region99: #{tpu_custom_call.1} parent=5 // pred_region
        %s1399 = ssub.s32 %s25, 2
        // Predicated region
        $region101: #{tpu_custom_call.1} parent=99 // pred_check
          %p1400 = pneg %p346
        $region102: #{tpu_custom_call.1} parent=99 // pred_check_branch
          %1402 = sbr.rel (%p1400) target = $region104
        $region103: #{tpu_custom_call.1} parent=99 // pred_region
          %s1403 = sand.u32 %s331, 1
          %s1404 = scalar_lea.sflag [#allocation7], %s1403
          %s1405 = sand.u32 %s331, 1
          %s1406 = smul.addr %s1405, 8
          %s1407 = scalar_lea.vmem [#allocation13], %s1406
          %1408 = dma.done %s1404, 128
        $region104: #{tpu_custom_call.1} parent=99 // pred_fallthru
          _
      $region100: #{tpu_custom_call.1} parent=5 // pred_fallthru
        _
    $region6: #{tpu_custom_call.1} parent=1 // loop_footer
      %s29 = sadd.s32 1, %s25
    $region7: #{tpu_custom_call.1} parent=1 // loop_footer_branch
      %24 = sbr.rel target = $region3
    $region8: #{tpu_custom_call.1} parent=1 // loop_exit
      _
    %1409 = vsyncpa [#allocation6], 1
    %s1410 = scalar_lea.sflag [#allocation6], 1
    %1411 = vsyncpa %s1410, 1
    %1412 = vsyncpa [#allocation9], 1
    %1413 = vsyncpa [#allocation12], 1
    %1414 = vsyncpa [#allocation7], 1
    %s1415 = scalar_lea.sflag [#allocation7], 1
    %1416 = vsyncpa %s1415, 1

</llo_original>
